<compile_context>
chip_gen: v5e
topology: v5e:2x2
jax: 0.10.0
libtpu: 0.0.40
codegen_flags: <defaults>
</compile_context>

<pallas_src>
import functools

import jax
import jax.numpy as jnp
from jax import lax
from jax.experimental import pallas as pl
from jax.experimental.pallas import tpu as pltpu

EMBED = 300
HIDDEN = 15
HP = 16          # hidden padded to 16 so fused-gate lane offsets are 0/16/32/48
INNER = 25
NCLASS = 2

# -------- layout of the packed small-parameter slab: (PARAM_ROWS, 128) f32 --------
R_WHH = 0        # rows  0:16,  lanes 0:64   fused recurrent weight (HP, 4*HP)
R_B   = 16       # row  16,     lanes 0:64   fused bias (1, 4*HP)
R_H0  = 24       # rows 24:26,  lanes 0:16   initial hidden (2, HP)  row0=seq1, row1=seq2
R_C0  = 26       # rows 26:28,  lanes 0:16   initial cell   (2, HP)
R_W1  = 32       # rows 32:112, lanes 0:25   classifier W1 (5*HP, INNER)
R_B1  = 112      # row 112,     lanes 0:25   classifier b1
R_W2  = 32       # rows 32:57,  lanes 64:66  classifier W2 (INNER, NCLASS)
R_B2  = 112      # row 112,     lanes 64:66  classifier b2
C_W2  = 64
PARAM_ROWS = 120
PARAM_COLS = 128


def siamese_lstm_kernel(xs_ref, wih_ref, par_ref, out_ref, *, L1, L2, vpu_recurrence):
    L_max = max(L1, L2)

    # ---- unpack the small-parameter slab with static slices (zero-cost views) ----
    whh  = par_ref[R_WHH:R_WHH + HP, 0:4 * HP]            # (HP, 4*HP), i/f/o cols pre-scaled
    bias = par_ref[R_B:R_B + 1, 0:4 * HP]                 # (1, 4*HP)
    h    = par_ref[R_H0:R_H0 + 2, 0:HP]                   # (2, HP): row0=seq1, row1=seq2
    c    = par_ref[R_C0:R_C0 + 2, 0:HP]

    # ---- hoisted input projection: ONE matmul for every timestep of both sequences,
    #      kept as a traced value in vregs (no VMEM scratch, no per-step reloads) ----
    # xs rows are interleaved: row 2t = seq1[t], row 2t+1 = seq2[t] (zero padded).
    gx = (jnp.dot(xs_ref[...], wih_ref[...], preferred_element_type=jnp.float32)
          + bias)                                         # (2*L_max, 4*HP)

    row_ids = lax.broadcasted_iota(jnp.int32, (2, HP), 0)

    if vpu_recurrence:
        # loop-invariant row views of whh for the VPU broadcast-accumulate formulation
        whh_rows = [whh[k:k + 1, :] for k in range(HP)]   # HP x (1, 4*HP)

    # ---- fully unrolled, interleaved recurrence (gate order i, f, g, o) ----
    for t in range(L_max):
        if vpu_recurrence:
            # (2,16)x(16,64) as 16 lane-broadcast multiplies + tree add: stays on VPU/XLU,
            # no per-step MXU push + result-drain on the serial h->h chain (v6e/v7x win).
            terms = [h[:, k:k + 1] * whh_rows[k] for k in range(HP)]
            while len(terms) > 1:
                nxt = [terms[i] + terms[i + 1] for i in range(0, len(terms) - 1, 2)]
                if len(terms) % 2:
                    nxt.append(terms[-1])
                terms = nxt
            gh = terms[0]                                  # (2, 4*HP)
        else:
            gh = jnp.dot(h, whh, preferred_element_type=jnp.float32)

        g = gx[2 * t:2 * t + 2, :] + gh                    # (2, 4*HP)

        # ONE 64-lane tanh covers all four gates: sigmoid(x) = 0.5*tanh(x/2) + 0.5 and the
        # 0.5 pre-scale of the i/f/o columns is already folded into wih/whh/bias.
        tg = jnp.tanh(g)
        i_g = 0.5 * tg[:, 0 * HP:1 * HP] + 0.5
        f_g = 0.5 * tg[:, 1 * HP:2 * HP] + 0.5
        g_g = tg[:, 2 * HP:3 * HP]
        o_g = 0.5 * tg[:, 3 * HP:4 * HP] + 0.5
        c_new = f_g * c + i_g * g_g
        h_new = o_g * jnp.tanh(c_new)

        a1, a2 = t < L1, t < L2                            # static (unrolled loop)
        if a1 and a2:
            h, c = h_new, c_new
        else:
            live_row = 0 if a1 else 1                      # freeze the finished sequence
            mask = row_ids == live_row
            h = jnp.where(mask, h_new, h)
            c = jnp.where(mask, c_new, c)

    v1 = h[0:1, :]                                         # (1, HP)
    v2 = h[1:2, :]

    # ---- feature vector [v1, |v1-v2|, v2, v1*v2, (v1+v2)/2] -> fused classifier ----
    feat = jnp.concatenate(
        [v1, jnp.abs(v1 - v2), v2, v1 * v2, (v1 + v2) * 0.5], axis=-1)   # (1, 5*HP)
    w1 = par_ref[R_W1:R_W1 + 5 * HP, 0:INNER]              # (5*HP, INNER), pad rows zero
    b1 = par_ref[R_B1:R_B1 + 1, 0:INNER]
    w2 = par_ref[R_W2:R_W2 + INNER, C_W2:C_W2 + NCLASS]    # (INNER, NCLASS)
    b2 = par_ref[R_B2:R_B2 + 1, C_W2:C_W2 + NCLASS]
    hid = jnp.dot(feat, w1, preferred_element_type=jnp.float32) + b1     # (1, INNER)
    out_ref[...] = jnp.dot(hid, w2, preferred_element_type=jnp.float32) + b2


def _use_vpu_recurrence():
    # Review guidance: on v6e/v7x the 256-wide MXU's per-matmul drain latency sits on the
    # serial recurrence, so keep the tiny recurrent dot on the VPU; on v5e/v4 (128x128
    # MXUs, lower drain latency) the MXU dot is ~break-even, so keep it there.
    try:
        kind = jax.devices()[0].device_kind.lower()
    except Exception:
        return True
    return not any(v in kind for v in ("v2", "v3", "v4", "v5"))


def siamese_lstm_forward(x1, x2, params):
    wih, slab = params
    L1, L2 = int(x1.shape[0]), int(x2.shape[0])
    L_max = max(L1, L2)

    # interleave the two (zero-padded) sequences: row 2t = x1[t], row 2t+1 = x2[t]
    x1p = jnp.pad(x1, ((0, L_max - L1), (0, 0)))
    x2p = jnp.pad(x2, ((0, L_max - L2), (0, 0)))
    xs = jnp.stack([x1p, x2p], axis=1).reshape(2 * L_max, EMBED)

    vmem = pl.BlockSpec(memory_space=pltpu.MemorySpace.VMEM)
    kernel = functools.partial(siamese_lstm_kernel, L1=L1, L2=L2,
                               vpu_recurrence=_use_vpu_recurrence())
    out = pl.pallas_call(
        kernel,
        out_shape=jax.ShapeDtypeStruct((1, NCLASS), jnp.float32),
        in_specs=[vmem, vmem, vmem],                       # only 3 input DMAs now
        out_specs=vmem,
    )(xs, wih, slab)
    return out.reshape(1, 1, NCLASS)                       # PyTorch output shape (1, 1, 2)


def make_params(key):
    ks = jax.random.split(key, 12)
    scale_l = 1.0 / jnp.sqrt(HIDDEN)
    # PyTorch-convention parameters
    w_ih = jax.random.uniform(ks[0], (4 * HIDDEN, EMBED), jnp.float32, -scale_l, scale_l)
    w_hh = jax.random.uniform(ks[1], (4 * HIDDEN, HIDDEN), jnp.float32, -scale_l, scale_l)
    b_ih = jax.random.uniform(ks[2], (4 * HIDDEN,), jnp.float32, -scale_l, scale_l)
    b_hh = jax.random.uniform(ks[3], (4 * HIDDEN,), jnp.float32, -scale_l, scale_l)
    w1_t = jax.random.uniform(ks[4], (INNER, 5 * HIDDEN), jnp.float32, -0.1, 0.1)
    b1_t = jax.random.uniform(ks[5], (INNER,), jnp.float32, -0.1, 0.1)
    w2_t = jax.random.uniform(ks[6], (NCLASS, INNER), jnp.float32, -0.2, 0.2)
    b2_t = jax.random.uniform(ks[7], (NCLASS,), jnp.float32, -0.2, 0.2)
    # random initial hidden/cell (Variable(torch.randn(...)) in the module) — deterministic here
    h01 = jax.random.normal(ks[8], (1, HIDDEN), jnp.float32)
    c01 = jax.random.normal(ks[9], (1, HIDDEN), jnp.float32)
    h02 = jax.random.normal(ks[10], (1, HIDDEN), jnp.float32)
    c02 = jax.random.normal(ks[11], (1, HIDDEN), jnp.float32)

    pad_h = HP - HIDDEN
    # 0.5 pre-scale on the i/f/o gates (sigmoid-via-tanh fold); g gate unscaled.
    gate_scale = jnp.array([0.5, 0.5, 1.0, 0.5], jnp.float32)

    # fused input-projection weight (E, 4*HP), gate order i, f, g, o; padded lanes = 0
    wih = jnp.transpose(w_ih.reshape(4, HIDDEN, EMBED), (0, 2, 1))        # (4, E, H)
    wih = wih * gate_scale.reshape(4, 1, 1)
    wih = jnp.pad(wih, ((0, 0), (0, 0), (0, pad_h)))                      # (4, E, HP)
    wih = jnp.transpose(wih, (1, 0, 2)).reshape(EMBED, 4 * HP)            # (E, 4*HP)

    # fused recurrent weight (HP, 4*HP); padded input row and output cols = 0
    whh = jnp.transpose(w_hh.reshape(4, HIDDEN, HIDDEN), (0, 2, 1))       # (4, Hin, Hout)
    whh = whh * gate_scale.reshape(4, 1, 1)
    whh = jnp.pad(whh, ((0, 0), (0, pad_h), (0, pad_h)))                  # (4, HP, HP)
    whh = jnp.transpose(whh, (1, 0, 2)).reshape(HP, 4 * HP)               # (HP, 4*HP)

    # fused bias (b_ih + b_hh), i/f/o pre-scaled, padded lanes = 0
    b = (b_ih + b_hh).reshape(4, HIDDEN) * gate_scale.reshape(4, 1)
    b = jnp.pad(b, ((0, 0), (0, pad_h))).reshape(4 * HP)

    # stacked initial states: row 0 = seq1, row 1 = seq2 (padded lane = 0)
    h0 = jnp.pad(jnp.concatenate([h01, h02], axis=0), ((0, 0), (0, pad_h)))   # (2, HP)
    c0 = jnp.pad(jnp.concatenate([c01, c02], axis=0), ((0, 0), (0, pad_h)))   # (2, HP)

    # classifier layer 1 as one (5*HP, INNER) slab, zero rows at padded feature lanes
    w1 = jnp.transpose(w1_t).reshape(5, HIDDEN, INNER)
    w1 = jnp.pad(w1, ((0, 0), (0, pad_h), (0, 0))).reshape(5 * HP, INNER)
    w2 = jnp.transpose(w2_t)                                              # (INNER, NCLASS)

    # ---- pack all the small parameters into ONE (PARAM_ROWS, 128) slab ----
    slab = jnp.zeros((PARAM_ROWS, PARAM_COLS), jnp.float32)
    slab = slab.at[R_WHH:R_WHH + HP, 0:4 * HP].set(whh)
    slab = slab.at[R_B, 0:4 * HP].set(b)
    slab = slab.at[R_H0:R_H0 + 2, 0:HP].set(h0)
    slab = slab.at[R_C0:R_C0 + 2, 0:HP].set(c0)
    slab = slab.at[R_W1:R_W1 + 5 * HP, 0:INNER].set(w1)
    slab = slab.at[R_B1, 0:INNER].set(b1_t)
    slab = slab.at[R_W2:R_W2 + INNER, C_W2:C_W2 + NCLASS].set(w2)
    slab = slab.at[R_B2, C_W2:C_W2 + NCLASS].set(b2_t)

    torch_style = (w_ih, w_hh, b_ih, b_hh, w1_t, b1_t, w2_t, b2_t, h01, c01, h02, c02)
    kernel_params = (wih, slab)
    return kernel_params, torch_style


def reference_forward(x1, x2, torch_style):
    """Pure-JAX reference mirroring the PyTorch module semantics."""
    (w_ih, w_hh, b_ih, b_hh, w1_t, b1_t, w2_t, b2_t, h01, c01, h02, c02) = torch_style

    def lstm(x, h, c):
        for t in range(x.shape[0]):
            gates = x[t:t + 1] @ w_ih.T + b_ih + h @ w_hh.T + b_hh
            i, f, g, o = jnp.split(gates, 4, axis=-1)
            i, f, o = jax.nn.sigmoid(i), jax.nn.sigmoid(f), jax.nn.sigmoid(o)
            g = jnp.tanh(g)
            c = f * c + i * g
            h = o * jnp.tanh(c)
        return h

    v1 = lstm(x1, h01, c01)
    v2 = lstm(x2, h02, c02)
    vec = jnp.concatenate([v1, jnp.abs(v1 - v2), v2, v1 * v2, (v1 + v2) / 2], axis=-1)
    out = (vec @ w1_t.T + b1_t) @ w2_t.T + b2_t
    return out.reshape(1, 1, NCLASS)


if __name__ == "__main__":
    key = jax.random.PRNGKey(0)
    k_emb, k_s1, k_s2, k_par = jax.random.split(key, 4)

    vocab = 50                                              # input_dim in the module
    embedding = jax.random.normal(k_emb, (vocab, EMBED), jnp.float32)
    s1 = jax.random.randint(k_s1, (8,), 0, vocab)           # sentence 1, 8 tokens
    s2 = jax.random.randint(k_s2, (6,), 0, vocab)           # sentence 2, 6 tokens

    # TODO(synk): nn.Embedding lookup is a gather — done as plain-JAX glue, not in-kernel.
    x1 = jnp.take(embedding, s1, axis=0)                    # (8, 300)
    x2 = jnp.take(embedding, s2, axis=0)                    # (6, 300)

    kernel_params, torch_style = make_params(k_par)

    out = siamese_lstm_forward(x1, x2, kernel_params)
    out = jax.block_until_ready(out)

    ref = reference_forward(x1, x2, torch_style)
    assert out.shape == (1, 1, NCLASS)
    assert jnp.allclose(out, ref, atol=1e-4, rtol=1e-4), (out, ref)

    print("KERNEL_OK")
</pallas_src>

<mosaic_0001>
module attributes {stable_mosaic.version = 11 : i64} {
  func.func @siamese_lstm_kernel(%arg0: memref<16x300xf32, #tpu.memory_space<vmem>>, %arg1: memref<300x64xf32, #tpu.memory_space<vmem>>, %arg2: memref<120x128xf32, #tpu.memory_space<vmem>>, %arg3: memref<1x2xf32, #tpu.memory_space<vmem>>) attributes {dimension_semantics = [], scalar_prefetch = 0 : i64, scratch_operands = 0 : i64, tpu.core_type = #tpu.core_type<tc>} {
    %c0 = arith.constant 0 : index
    %c0_0 = arith.constant 0 : index
    %0 = vector.load %arg2[%c0, %c0_0] : memref<120x128xf32, #tpu.memory_space<vmem>>, vector<16x64xf32>
    %c16 = arith.constant 16 : index
    %c0_1 = arith.constant 0 : index
    %1 = vector.load %arg2[%c16, %c0_1] : memref<120x128xf32, #tpu.memory_space<vmem>>, vector<1x64xf32>
    %c24 = arith.constant 24 : index
    %c0_2 = arith.constant 0 : index
    %2 = vector.load %arg2[%c24, %c0_2] : memref<120x128xf32, #tpu.memory_space<vmem>>, vector<2x16xf32>
    %c26 = arith.constant 26 : index
    %c0_3 = arith.constant 0 : index
    %3 = vector.load %arg2[%c26, %c0_3] : memref<120x128xf32, #tpu.memory_space<vmem>>, vector<2x16xf32>
    %c0_4 = arith.constant 0 : index
    %c0_5 = arith.constant 0 : index
    %4 = vector.load %arg0[%c0_4, %c0_5] : memref<16x300xf32, #tpu.memory_space<vmem>>, vector<16x300xf32>
    %c0_6 = arith.constant 0 : index
    %c0_7 = arith.constant 0 : index
    %5 = vector.load %arg1[%c0_6, %c0_7] : memref<300x64xf32, #tpu.memory_space<vmem>>, vector<300x64xf32>
    %cst = arith.constant dense<0.000000e+00> : vector<16x64xf32>
    %6 = tpu.matmul %4, %5, %cst {dimension_numbers = #tpu.dot_dimension_numbers<[1], [0], [0], [1], [0, 0, 1, 1], [], []>} : vector<16x300xf32>, vector<300x64xf32>, vector<16x64xf32> -> vector<16x64xf32>
    %7 = vector.broadcast %1 : vector<1x64xf32> to vector<16x64xf32>
    %8 = arith.addf %6, %7 : vector<16x64xf32>
    %9 = tpu.iota {dimensions = array<i32: 0>} : vector<2x16xi32>
    %10 = vector.extract_strided_slice %0 {offsets = [0, 0], sizes = [1, 64], strides = [1, 1]} : vector<16x64xf32> to vector<1x64xf32>
    %11 = vector.extract_strided_slice %0 {offsets = [1, 0], sizes = [1, 64], strides = [1, 1]} : vector<16x64xf32> to vector<1x64xf32>
    %12 = vector.extract_strided_slice %0 {offsets = [2, 0], sizes = [1, 64], strides = [1, 1]} : vector<16x64xf32> to vector<1x64xf32>
    %13 = vector.extract_strided_slice %0 {offsets = [3, 0], sizes = [1, 64], strides = [1, 1]} : vector<16x64xf32> to vector<1x64xf32>
    %14 = vector.extract_strided_slice %0 {offsets = [4, 0], sizes = [1, 64], strides = [1, 1]} : vector<16x64xf32> to vector<1x64xf32>
    %15 = vector.extract_strided_slice %0 {offsets = [5, 0], sizes = [1, 64], strides = [1, 1]} : vector<16x64xf32> to vector<1x64xf32>
    %16 = vector.extract_strided_slice %0 {offsets = [6, 0], sizes = [1, 64], strides = [1, 1]} : vector<16x64xf32> to vector<1x64xf32>
    %17 = vector.extract_strided_slice %0 {offsets = [7, 0], sizes = [1, 64], strides = [1, 1]} : vector<16x64xf32> to vector<1x64xf32>
    %18 = vector.extract_strided_slice %0 {offsets = [8, 0], sizes = [1, 64], strides = [1, 1]} : vector<16x64xf32> to vector<1x64xf32>
    %19 = vector.extract_strided_slice %0 {offsets = [9, 0], sizes = [1, 64], strides = [1, 1]} : vector<16x64xf32> to vector<1x64xf32>
    %20 = vector.extract_strided_slice %0 {offsets = [10, 0], sizes = [1, 64], strides = [1, 1]} : vector<16x64xf32> to vector<1x64xf32>
    %21 = vector.extract_strided_slice %0 {offsets = [11, 0], sizes = [1, 64], strides = [1, 1]} : vector<16x64xf32> to vector<1x64xf32>
    %22 = vector.extract_strided_slice %0 {offsets = [12, 0], sizes = [1, 64], strides = [1, 1]} : vector<16x64xf32> to vector<1x64xf32>
    %23 = vector.extract_strided_slice %0 {offsets = [13, 0], sizes = [1, 64], strides = [1, 1]} : vector<16x64xf32> to vector<1x64xf32>
    %24 = vector.extract_strided_slice %0 {offsets = [14, 0], sizes = [1, 64], strides = [1, 1]} : vector<16x64xf32> to vector<1x64xf32>
    %25 = vector.extract_strided_slice %0 {offsets = [15, 0], sizes = [1, 64], strides = [1, 1]} : vector<16x64xf32> to vector<1x64xf32>
    %26 = vector.extract_strided_slice %2 {offsets = [0, 0], sizes = [2, 1], strides = [1, 1]} : vector<2x16xf32> to vector<2x1xf32>
    %27 = vector.broadcast %26 : vector<2x1xf32> to vector<2x64xf32>
    %28 = vector.broadcast %10 : vector<1x64xf32> to vector<2x64xf32>
    %29 = arith.mulf %27, %28 : vector<2x64xf32>
    %30 = vector.extract_strided_slice %2 {offsets = [0, 1], sizes = [2, 1], strides = [1, 1]} : vector<2x16xf32> to vector<2x1xf32>
    %31 = vector.broadcast %30 : vector<2x1xf32> to vector<2x64xf32>
    %32 = vector.broadcast %11 : vector<1x64xf32> to vector<2x64xf32>
    %33 = arith.mulf %31, %32 : vector<2x64xf32>
    %34 = vector.extract_strided_slice %2 {offsets = [0, 2], sizes = [2, 1], strides = [1, 1]} : vector<2x16xf32> to vector<2x1xf32>
    %35 = vector.broadcast %34 : vector<2x1xf32> to vector<2x64xf32>
    %36 = vector.broadcast %12 : vector<1x64xf32> to vector<2x64xf32>
    %37 = arith.mulf %35, %36 : vector<2x64xf32>
    %38 = vector.extract_strided_slice %2 {offsets = [0, 3], sizes = [2, 1], strides = [1, 1]} : vector<2x16xf32> to vector<2x1xf32>
    %39 = vector.broadcast %38 : vector<2x1xf32> to vector<2x64xf32>
    %40 = vector.broadcast %13 : vector<1x64xf32> to vector<2x64xf32>
    %41 = arith.mulf %39, %40 : vector<2x64xf32>
    %42 = vector.extract_strided_slice %2 {offsets = [0, 4], sizes = [2, 1], strides = [1, 1]} : vector<2x16xf32> to vector<2x1xf32>
    %43 = vector.broadcast %42 : vector<2x1xf32> to vector<2x64xf32>
    %44 = vector.broadcast %14 : vector<1x64xf32> to vector<2x64xf32>
    %45 = arith.mulf %43, %44 : vector<2x64xf32>
    %46 = vector.extract_strided_slice %2 {offsets = [0, 5], sizes = [2, 1], strides = [1, 1]} : vector<2x16xf32> to vector<2x1xf32>
    %47 = vector.broadcast %46 : vector<2x1xf32> to vector<2x64xf32>
    %48 = vector.broadcast %15 : vector<1x64xf32> to vector<2x64xf32>
    %49 = arith.mulf %47, %48 : vector<2x64xf32>
    %50 = vector.extract_strided_slice %2 {offsets = [0, 6], sizes = [2, 1], strides = [1, 1]} : vector<2x16xf32> to vector<2x1xf32>
    %51 = vector.broadcast %50 : vector<2x1xf32> to vector<2x64xf32>
    %52 = vector.broadcast %16 : vector<1x64xf32> to vector<2x64xf32>
    %53 = arith.mulf %51, %52 : vector<2x64xf32>
    %54 = vector.extract_strided_slice %2 {offsets = [0, 7], sizes = [2, 1], strides = [1, 1]} : vector<2x16xf32> to vector<2x1xf32>
    %55 = vector.broadcast %54 : vector<2x1xf32> to vector<2x64xf32>
    %56 = vector.broadcast %17 : vector<1x64xf32> to vector<2x64xf32>
    %57 = arith.mulf %55, %56 : vector<2x64xf32>
    %58 = vector.extract_strided_slice %2 {offsets = [0, 8], sizes = [2, 1], strides = [1, 1]} : vector<2x16xf32> to vector<2x1xf32>
    %59 = vector.broadcast %58 : vector<2x1xf32> to vector<2x64xf32>
    %60 = vector.broadcast %18 : vector<1x64xf32> to vector<2x64xf32>
    %61 = arith.mulf %59, %60 : vector<2x64xf32>
    %62 = vector.extract_strided_slice %2 {offsets = [0, 9], sizes = [2, 1], strides = [1, 1]} : vector<2x16xf32> to vector<2x1xf32>
    %63 = vector.broadcast %62 : vector<2x1xf32> to vector<2x64xf32>
    %64 = vector.broadcast %19 : vector<1x64xf32> to vector<2x64xf32>
    %65 = arith.mulf %63, %64 : vector<2x64xf32>
    %66 = vector.extract_strided_slice %2 {offsets = [0, 10], sizes = [2, 1], strides = [1, 1]} : vector<2x16xf32> to vector<2x1xf32>
    %67 = vector.broadcast %66 : vector<2x1xf32> to vector<2x64xf32>
    %68 = vector.broadcast %20 : vector<1x64xf32> to vector<2x64xf32>
    %69 = arith.mulf %67, %68 : vector<2x64xf32>
    %70 = vector.extract_strided_slice %2 {offsets = [0, 11], sizes = [2, 1], strides = [1, 1]} : vector<2x16xf32> to vector<2x1xf32>
    %71 = vector.broadcast %70 : vector<2x1xf32> to vector<2x64xf32>
    %72 = vector.broadcast %21 : vector<1x64xf32> to vector<2x64xf32>
    %73 = arith.mulf %71, %72 : vector<2x64xf32>
    %74 = vector.extract_strided_slice %2 {offsets = [0, 12], sizes = [2, 1], strides = [1, 1]} : vector<2x16xf32> to vector<2x1xf32>
    %75 = vector.broadcast %74 : vector<2x1xf32> to vector<2x64xf32>
    %76 = vector.broadcast %22 : vector<1x64xf32> to vector<2x64xf32>
    %77 = arith.mulf %75, %76 : vector<2x64xf32>
    %78 = vector.extract_strided_slice %2 {offsets = [0, 13], sizes = [2, 1], strides = [1, 1]} : vector<2x16xf32> to vector<2x1xf32>
    %79 = vector.broadcast %78 : vector<2x1xf32> to vector<2x64xf32>
    %80 = vector.broadcast %23 : vector<1x64xf32> to vector<2x64xf32>
    %81 = arith.mulf %79, %80 : vector<2x64xf32>
    %82 = vector.extract_strided_slice %2 {offsets = [0, 14], sizes = [2, 1], strides = [1, 1]} : vector<2x16xf32> to vector<2x1xf32>
    %83 = vector.broadcast %82 : vector<2x1xf32> to vector<2x64xf32>
    %84 = vector.broadcast %24 : vector<1x64xf32> to vector<2x64xf32>
    %85 = arith.mulf %83, %84 : vector<2x64xf32>
    %86 = vector.extract_strided_slice %2 {offsets = [0, 15], sizes = [2, 1], strides = [1, 1]} : vector<2x16xf32> to vector<2x1xf32>
    %87 = vector.broadcast %86 : vector<2x1xf32> to vector<2x64xf32>
    %88 = vector.broadcast %25 : vector<1x64xf32> to vector<2x64xf32>
    %89 = arith.mulf %87, %88 : vector<2x64xf32>
    %90 = arith.addf %29, %33 : vector<2x64xf32>
    %91 = arith.addf %37, %41 : vector<2x64xf32>
    %92 = arith.addf %45, %49 : vector<2x64xf32>
    %93 = arith.addf %53, %57 : vector<2x64xf32>
    %94 = arith.addf %61, %65 : vector<2x64xf32>
    %95 = arith.addf %69, %73 : vector<2x64xf32>
    %96 = arith.addf %77, %81 : vector<2x64xf32>
    %97 = arith.addf %85, %89 : vector<2x64xf32>
    %98 = arith.addf %90, %91 : vector<2x64xf32>
    %99 = arith.addf %92, %93 : vector<2x64xf32>
    %100 = arith.addf %94, %95 : vector<2x64xf32>
    %101 = arith.addf %96, %97 : vector<2x64xf32>
    %102 = arith.addf %98, %99 : vector<2x64xf32>
    %103 = arith.addf %100, %101 : vector<2x64xf32>
    %104 = arith.addf %102, %103 : vector<2x64xf32>
    %105 = vector.extract_strided_slice %8 {offsets = [0, 0], sizes = [2, 64], strides = [1, 1]} : vector<16x64xf32> to vector<2x64xf32>
    %106 = arith.addf %105, %104 : vector<2x64xf32>
    %107 = math.tanh %106 : vector<2x64xf32>
    %108 = vector.extract_strided_slice %107 {offsets = [0, 0], sizes = [2, 16], strides = [1, 1]} : vector<2x64xf32> to vector<2x16xf32>
    %cst_8 = arith.constant 5.000000e-01 : f32
    %109 = vector.broadcast %cst_8 : f32 to vector<2x16xf32>
    %110 = arith.mulf %109, %108 : vector<2x16xf32>
    %cst_9 = arith.constant 5.000000e-01 : f32
    %111 = vector.broadcast %cst_9 : f32 to vector<2x16xf32>
    %112 = arith.addf %110, %111 : vector<2x16xf32>
    %113 = vector.extract_strided_slice %107 {offsets = [0, 16], sizes = [2, 16], strides = [1, 1]} : vector<2x64xf32> to vector<2x16xf32>
    %cst_10 = arith.constant 5.000000e-01 : f32
    %114 = vector.broadcast %cst_10 : f32 to vector<2x16xf32>
    %115 = arith.mulf %114, %113 : vector<2x16xf32>
    %cst_11 = arith.constant 5.000000e-01 : f32
    %116 = vector.broadcast %cst_11 : f32 to vector<2x16xf32>
    %117 = arith.addf %115, %116 : vector<2x16xf32>
    %118 = vector.extract_strided_slice %107 {offsets = [0, 32], sizes = [2, 16], strides = [1, 1]} : vector<2x64xf32> to vector<2x16xf32>
    %119 = vector.extract_strided_slice %107 {offsets = [0, 48], sizes = [2, 16], strides = [1, 1]} : vector<2x64xf32> to vector<2x16xf32>
    %cst_12 = arith.constant 5.000000e-01 : f32
    %120 = vector.broadcast %cst_12 : f32 to vector<2x16xf32>
    %121 = arith.mulf %120, %119 : vector<2x16xf32>
    %cst_13 = arith.constant 5.000000e-01 : f32
    %122 = vector.broadcast %cst_13 : f32 to vector<2x16xf32>
    %123 = arith.addf %121, %122 : vector<2x16xf32>
    %124 = arith.mulf %117, %3 : vector<2x16xf32>
    %125 = arith.mulf %112, %118 : vector<2x16xf32>
    %126 = arith.addf %124, %125 : vector<2x16xf32>
    %127 = math.tanh %126 : vector<2x16xf32>
    %128 = arith.mulf %123, %127 : vector<2x16xf32>
    %129 = vector.extract_strided_slice %128 {offsets = [0, 0], sizes = [2, 1], strides = [1, 1]} : vector<2x16xf32> to vector<2x1xf32>
    %130 = vector.broadcast %129 : vector<2x1xf32> to vector<2x64xf32>
    %131 = vector.broadcast %10 : vector<1x64xf32> to vector<2x64xf32>
    %132 = arith.mulf %130, %131 : vector<2x64xf32>
    %133 = vector.extract_strided_slice %128 {offsets = [0, 1], sizes = [2, 1], strides = [1, 1]} : vector<2x16xf32> to vector<2x1xf32>
    %134 = vector.broadcast %133 : vector<2x1xf32> to vector<2x64xf32>
    %135 = vector.broadcast %11 : vector<1x64xf32> to vector<2x64xf32>
    %136 = arith.mulf %134, %135 : vector<2x64xf32>
    %137 = vector.extract_strided_slice %128 {offsets = [0, 2], sizes = [2, 1], strides = [1, 1]} : vector<2x16xf32> to vector<2x1xf32>
    %138 = vector.broadcast %137 : vector<2x1xf32> to vector<2x64xf32>
    %139 = vector.broadcast %12 : vector<1x64xf32> to vector<2x64xf32>
    %140 = arith.mulf %138, %139 : vector<2x64xf32>
    %141 = vector.extract_strided_slice %128 {offsets = [0, 3], sizes = [2, 1], strides = [1, 1]} : vector<2x16xf32> to vector<2x1xf32>
    %142 = vector.broadcast %141 : vector<2x1xf32> to vector<2x64xf32>
    %143 = vector.broadcast %13 : vector<1x64xf32> to vector<2x64xf32>
    %144 = arith.mulf %142, %143 : vector<2x64xf32>
    %145 = vector.extract_strided_slice %128 {offsets = [0, 4], sizes = [2, 1], strides = [1, 1]} : vector<2x16xf32> to vector<2x1xf32>
    %146 = vector.broadcast %145 : vector<2x1xf32> to vector<2x64xf32>
    %147 = vector.broadcast %14 : vector<1x64xf32> to vector<2x64xf32>
    %148 = arith.mulf %146, %147 : vector<2x64xf32>
    %149 = vector.extract_strided_slice %128 {offsets = [0, 5], sizes = [2, 1], strides = [1, 1]} : vector<2x16xf32> to vector<2x1xf32>
    %150 = vector.broadcast %149 : vector<2x1xf32> to vector<2x64xf32>
    %151 = vector.broadcast %15 : vector<1x64xf32> to vector<2x64xf32>
    %152 = arith.mulf %150, %151 : vector<2x64xf32>
    %153 = vector.extract_strided_slice %128 {offsets = [0, 6], sizes = [2, 1], strides = [1, 1]} : vector<2x16xf32> to vector<2x1xf32>
    %154 = vector.broadcast %153 : vector<2x1xf32> to vector<2x64xf32>
    %155 = vector.broadcast %16 : vector<1x64xf32> to vector<2x64xf32>
    %156 = arith.mulf %154, %155 : vector<2x64xf32>
    %157 = vector.extract_strided_slice %128 {offsets = [0, 7], sizes = [2, 1], strides = [1, 1]} : vector<2x16xf32> to vector<2x1xf32>
    %158 = vector.broadcast %157 : vector<2x1xf32> to vector<2x64xf32>
    %159 = vector.broadcast %17 : vector<1x64xf32> to vector<2x64xf32>
    %160 = arith.mulf %158, %159 : vector<2x64xf32>
    %161 = vector.extract_strided_slice %128 {offsets = [0, 8], sizes = [2, 1], strides = [1, 1]} : vector<2x16xf32> to vector<2x1xf32>
    %162 = vector.broadcast %161 : vector<2x1xf32> to vector<2x64xf32>
    %163 = vector.broadcast %18 : vector<1x64xf32> to vector<2x64xf32>
    %164 = arith.mulf %162, %163 : vector<2x64xf32>
    %165 = vector.extract_strided_slice %128 {offsets = [0, 9], sizes = [2, 1], strides = [1, 1]} : vector<2x16xf32> to vector<2x1xf32>
    %166 = vector.broadcast %165 : vector<2x1xf32> to vector<2x64xf32>
    %167 = vector.broadcast %19 : vector<1x64xf32> to vector<2x64xf32>
    %168 = arith.mulf %166, %167 : vector<2x64xf32>
    %169 = vector.extract_strided_slice %128 {offsets = [0, 10], sizes = [2, 1], strides = [1, 1]} : vector<2x16xf32> to vector<2x1xf32>
    %170 = vector.broadcast %169 : vector<2x1xf32> to vector<2x64xf32>
    %171 = vector.broadcast %20 : vector<1x64xf32> to vector<2x64xf32>
    %172 = arith.mulf %170, %171 : vector<2x64xf32>
    %173 = vector.extract_strided_slice %128 {offsets = [0, 11], sizes = [2, 1], strides = [1, 1]} : vector<2x16xf32> to vector<2x1xf32>
    %174 = vector.broadcast %173 : vector<2x1xf32> to vector<2x64xf32>
    %175 = vector.broadcast %21 : vector<1x64xf32> to vector<2x64xf32>
    %176 = arith.mulf %174, %175 : vector<2x64xf32>
    %177 = vector.extract_strided_slice %128 {offsets = [0, 12], sizes = [2, 1], strides = [1, 1]} : vector<2x16xf32> to vector<2x1xf32>
    %178 = vector.broadcast %177 : vector<2x1xf32> to vector<2x64xf32>
    %179 = vector.broadcast %22 : vector<1x64xf32> to vector<2x64xf32>
    %180 = arith.mulf %178, %179 : vector<2x64xf32>
    %181 = vector.extract_strided_slice %128 {offsets = [0, 13], sizes = [2, 1], strides = [1, 1]} : vector<2x16xf32> to vector<2x1xf32>
    %182 = vector.broadcast %181 : vector<2x1xf32> to vector<2x64xf32>
    %183 = vector.broadcast %23 : vector<1x64xf32> to vector<2x64xf32>
    %184 = arith.mulf %182, %183 : vector<2x64xf32>
    %185 = vector.extract_strided_slice %128 {offsets = [0, 14], sizes = [2, 1], strides = [1, 1]} : vector<2x16xf32> to vector<2x1xf32>
    %186 = vector.broadcast %185 : vector<2x1xf32> to vector<2x64xf32>
    %187 = vector.broadcast %24 : vector<1x64xf32> to vector<2x64xf32>
    %188 = arith.mulf %186, %187 : vector<2x64xf32>
    %189 = vector.extract_strided_slice %128 {offsets = [0, 15], sizes = [2, 1], strides = [1, 1]} : vector<2x16xf32> to vector<2x1xf32>
    %190 = vector.broadcast %189 : vector<2x1xf32> to vector<2x64xf32>
    %191 = vector.broadcast %25 : vector<1x64xf32> to vector<2x64xf32>
    %192 = arith.mulf %190, %191 : vector<2x64xf32>
    %193 = arith.addf %132, %136 : vector<2x64xf32>
    %194 = arith.addf %140, %144 : vector<2x64xf32>
    %195 = arith.addf %148, %152 : vector<2x64xf32>
    %196 = arith.addf %156, %160 : vector<2x64xf32>
    %197 = arith.addf %164, %168 : vector<2x64xf32>
    %198 = arith.addf %172, %176 : vector<2x64xf32>
    %199 = arith.addf %180, %184 : vector<2x64xf32>
    %200 = arith.addf %188, %192 : vector<2x64xf32>
    %201 = arith.addf %193, %194 : vector<2x64xf32>
    %202 = arith.addf %195, %196 : vector<2x64xf32>
    %203 = arith.addf %197, %198 : vector<2x64xf32>
    %204 = arith.addf %199, %200 : vector<2x64xf32>
    %205 = arith.addf %201, %202 : vector<2x64xf32>
    %206 = arith.addf %203, %204 : vector<2x64xf32>
    %207 = arith.addf %205, %206 : vector<2x64xf32>
    %208 = vector.extract_strided_slice %8 {offsets = [2, 0], sizes = [2, 64], strides = [1, 1]} : vector<16x64xf32> to vector<2x64xf32>
    %209 = arith.addf %208, %207 : vector<2x64xf32>
    %210 = math.tanh %209 : vector<2x64xf32>
    %211 = vector.extract_strided_slice %210 {offsets = [0, 0], sizes = [2, 16], strides = [1, 1]} : vector<2x64xf32> to vector<2x16xf32>
    %cst_14 = arith.constant 5.000000e-01 : f32
    %212 = vector.broadcast %cst_14 : f32 to vector<2x16xf32>
    %213 = arith.mulf %212, %211 : vector<2x16xf32>
    %cst_15 = arith.constant 5.000000e-01 : f32
    %214 = vector.broadcast %cst_15 : f32 to vector<2x16xf32>
    %215 = arith.addf %213, %214 : vector<2x16xf32>
    %216 = vector.extract_strided_slice %210 {offsets = [0, 16], sizes = [2, 16], strides = [1, 1]} : vector<2x64xf32> to vector<2x16xf32>
    %cst_16 = arith.constant 5.000000e-01 : f32
    %217 = vector.broadcast %cst_16 : f32 to vector<2x16xf32>
    %218 = arith.mulf %217, %216 : vector<2x16xf32>
    %cst_17 = arith.constant 5.000000e-01 : f32
    %219 = vector.broadcast %cst_17 : f32 to vector<2x16xf32>
    %220 = arith.addf %218, %219 : vector<2x16xf32>
    %221 = vector.extract_strided_slice %210 {offsets = [0, 32], sizes = [2, 16], strides = [1, 1]} : vector<2x64xf32> to vector<2x16xf32>
    %222 = vector.extract_strided_slice %210 {offsets = [0, 48], sizes = [2, 16], strides = [1, 1]} : vector<2x64xf32> to vector<2x16xf32>
    %cst_18 = arith.constant 5.000000e-01 : f32
    %223 = vector.broadcast %cst_18 : f32 to vector<2x16xf32>
    %224 = arith.mulf %223, %222 : vector<2x16xf32>
    %cst_19 = arith.constant 5.000000e-01 : f32
    %225 = vector.broadcast %cst_19 : f32 to vector<2x16xf32>
    %226 = arith.addf %224, %225 : vector<2x16xf32>
    %227 = arith.mulf %220, %126 : vector<2x16xf32>
    %228 = arith.mulf %215, %221 : vector<2x16xf32>
    %229 = arith.addf %227, %228 : vector<2x16xf32>
    %230 = math.tanh %229 : vector<2x16xf32>
    %231 = arith.mulf %226, %230 : vector<2x16xf32>
    %232 = vector.extract_strided_slice %231 {offsets = [0, 0], sizes = [2, 1], strides = [1, 1]} : vector<2x16xf32> to vector<2x1xf32>
    %233 = vector.broadcast %232 : vector<2x1xf32> to vector<2x64xf32>
    %234 = vector.broadcast %10 : vector<1x64xf32> to vector<2x64xf32>
    %235 = arith.mulf %233, %234 : vector<2x64xf32>
    %236 = vector.extract_strided_slice %231 {offsets = [0, 1], sizes = [2, 1], strides = [1, 1]} : vector<2x16xf32> to vector<2x1xf32>
    %237 = vector.broadcast %236 : vector<2x1xf32> to vector<2x64xf32>
    %238 = vector.broadcast %11 : vector<1x64xf32> to vector<2x64xf32>
    %239 = arith.mulf %237, %238 : vector<2x64xf32>
    %240 = vector.extract_strided_slice %231 {offsets = [0, 2], sizes = [2, 1], strides = [1, 1]} : vector<2x16xf32> to vector<2x1xf32>
    %241 = vector.broadcast %240 : vector<2x1xf32> to vector<2x64xf32>
    %242 = vector.broadcast %12 : vector<1x64xf32> to vector<2x64xf32>
    %243 = arith.mulf %241, %242 : vector<2x64xf32>
    %244 = vector.extract_strided_slice %231 {offsets = [0, 3], sizes = [2, 1], strides = [1, 1]} : vector<2x16xf32> to vector<2x1xf32>
    %245 = vector.broadcast %244 : vector<2x1xf32> to vector<2x64xf32>
    %246 = vector.broadcast %13 : vector<1x64xf32> to vector<2x64xf32>
    %247 = arith.mulf %245, %246 : vector<2x64xf32>
    %248 = vector.extract_strided_slice %231 {offsets = [0, 4], sizes = [2, 1], strides = [1, 1]} : vector<2x16xf32> to vector<2x1xf32>
    %249 = vector.broadcast %248 : vector<2x1xf32> to vector<2x64xf32>
    %250 = vector.broadcast %14 : vector<1x64xf32> to vector<2x64xf32>
    %251 = arith.mulf %249, %250 : vector<2x64xf32>
    %252 = vector.extract_strided_slice %231 {offsets = [0, 5], sizes = [2, 1], strides = [1, 1]} : vector<2x16xf32> to vector<2x1xf32>
    %253 = vector.broadcast %252 : vector<2x1xf32> to vector<2x64xf32>
    %254 = vector.broadcast %15 : vector<1x64xf32> to vector<2x64xf32>
    %255 = arith.mulf %253, %254 : vector<2x64xf32>
    %256 = vector.extract_strided_slice %231 {offsets = [0, 6], sizes = [2, 1], strides = [1, 1]} : vector<2x16xf32> to vector<2x1xf32>
    %257 = vector.broadcast %256 : vector<2x1xf32> to vector<2x64xf32>
    %258 = vector.broadcast %16 : vector<1x64xf32> to vector<2x64xf32>
    %259 = arith.mulf %257, %258 : vector<2x64xf32>
    %260 = vector.extract_strided_slice %231 {offsets = [0, 7], sizes = [2, 1], strides = [1, 1]} : vector<2x16xf32> to vector<2x1xf32>
    %261 = vector.broadcast %260 : vector<2x1xf32> to vector<2x64xf32>
    %262 = vector.broadcast %17 : vector<1x64xf32> to vector<2x64xf32>
    %263 = arith.mulf %261, %262 : vector<2x64xf32>
    %264 = vector.extract_strided_slice %231 {offsets = [0, 8], sizes = [2, 1], strides = [1, 1]} : vector<2x16xf32> to vector<2x1xf32>
    %265 = vector.broadcast %264 : vector<2x1xf32> to vector<2x64xf32>
    %266 = vector.broadcast %18 : vector<1x64xf32> to vector<2x64xf32>
    %267 = arith.mulf %265, %266 : vector<2x64xf32>
    %268 = vector.extract_strided_slice %231 {offsets = [0, 9], sizes = [2, 1], strides = [1, 1]} : vector<2x16xf32> to vector<2x1xf32>
    %269 = vector.broadcast %268 : vector<2x1xf32> to vector<2x64xf32>
    %270 = vector.broadcast %19 : vector<1x64xf32> to vector<2x64xf32>
    %271 = arith.mulf %269, %270 : vector<2x64xf32>
    %272 = vector.extract_strided_slice %231 {offsets = [0, 10], sizes = [2, 1], strides = [1, 1]} : vector<2x16xf32> to vector<2x1xf32>
    %273 = vector.broadcast %272 : vector<2x1xf32> to vector<2x64xf32>
    %274 = vector.broadcast %20 : vector<1x64xf32> to vector<2x64xf32>
    %275 = arith.mulf %273, %274 : vector<2x64xf32>
    %276 = vector.extract_strided_slice %231 {offsets = [0, 11], sizes = [2, 1], strides = [1, 1]} : vector<2x16xf32> to vector<2x1xf32>
    %277 = vector.broadcast %276 : vector<2x1xf32> to vector<2x64xf32>
    %278 = vector.broadcast %21 : vector<1x64xf32> to vector<2x64xf32>
    %279 = arith.mulf %277, %278 : vector<2x64xf32>
    %280 = vector.extract_strided_slice %231 {offsets = [0, 12], sizes = [2, 1], strides = [1, 1]} : vector<2x16xf32> to vector<2x1xf32>
    %281 = vector.broadcast %280 : vector<2x1xf32> to vector<2x64xf32>
    %282 = vector.broadcast %22 : vector<1x64xf32> to vector<2x64xf32>
    %283 = arith.mulf %281, %282 : vector<2x64xf32>
    %284 = vector.extract_strided_slice %231 {offsets = [0, 13], sizes = [2, 1], strides = [1, 1]} : vector<2x16xf32> to vector<2x1xf32>
    %285 = vector.broadcast %284 : vector<2x1xf32> to vector<2x64xf32>
    %286 = vector.broadcast %23 : vector<1x64xf32> to vector<2x64xf32>
    %287 = arith.mulf %285, %286 : vector<2x64xf32>
    %288 = vector.extract_strided_slice %231 {offsets = [0, 14], sizes = [2, 1], strides = [1, 1]} : vector<2x16xf32> to vector<2x1xf32>
    %289 = vector.broadcast %288 : vector<2x1xf32> to vector<2x64xf32>
    %290 = vector.broadcast %24 : vector<1x64xf32> to vector<2x64xf32>
    %291 = arith.mulf %289, %290 : vector<2x64xf32>
    %292 = vector.extract_strided_slice %231 {offsets = [0, 15], sizes = [2, 1], strides = [1, 1]} : vector<2x16xf32> to vector<2x1xf32>
    %293 = vector.broadcast %292 : vector<2x1xf32> to vector<2x64xf32>
    %294 = vector.broadcast %25 : vector<1x64xf32> to vector<2x64xf32>
    %295 = arith.mulf %293, %294 : vector<2x64xf32>
    %296 = arith.addf %235, %239 : vector<2x64xf32>
    %297 = arith.addf %243, %247 : vector<2x64xf32>
    %298 = arith.addf %251, %255 : vector<2x64xf32>
    %299 = arith.addf %259, %263 : vector<2x64xf32>
    %300 = arith.addf %267, %271 : vector<2x64xf32>
    %301 = arith.addf %275, %279 : vector<2x64xf32>
    %302 = arith.addf %283, %287 : vector<2x64xf32>
    %303 = arith.addf %291, %295 : vector<2x64xf32>
    %304 = arith.addf %296, %297 : vector<2x64xf32>
    %305 = arith.addf %298, %299 : vector<2x64xf32>
    %306 = arith.addf %300, %301 : vector<2x64xf32>
    %307 = arith.addf %302, %303 : vector<2x64xf32>
    %308 = arith.addf %304, %305 : vector<2x64xf32>
    %309 = arith.addf %306, %307 : vector<2x64xf32>
    %310 = arith.addf %308, %309 : vector<2x64xf32>
    %311 = vector.extract_strided_slice %8 {offsets = [4, 0], sizes = [2, 64], strides = [1, 1]} : vector<16x64xf32> to vector<2x64xf32>
    %312 = arith.addf %311, %310 : vector<2x64xf32>
    %313 = math.tanh %312 : vector<2x64xf32>
    %314 = vector.extract_strided_slice %313 {offsets = [0, 0], sizes = [2, 16], strides = [1, 1]} : vector<2x64xf32> to vector<2x16xf32>
    %cst_20 = arith.constant 5.000000e-01 : f32
    %315 = vector.broadcast %cst_20 : f32 to vector<2x16xf32>
    %316 = arith.mulf %315, %314 : vector<2x16xf32>
    %cst_21 = arith.constant 5.000000e-01 : f32
    %317 = vector.broadcast %cst_21 : f32 to vector<2x16xf32>
    %318 = arith.addf %316, %317 : vector<2x16xf32>
    %319 = vector.extract_strided_slice %313 {offsets = [0, 16], sizes = [2, 16], strides = [1, 1]} : vector<2x64xf32> to vector<2x16xf32>
    %cst_22 = arith.constant 5.000000e-01 : f32
    %320 = vector.broadcast %cst_22 : f32 to vector<2x16xf32>
    %321 = arith.mulf %320, %319 : vector<2x16xf32>
    %cst_23 = arith.constant 5.000000e-01 : f32
    %322 = vector.broadcast %cst_23 : f32 to vector<2x16xf32>
    %323 = arith.addf %321, %322 : vector<2x16xf32>
    %324 = vector.extract_strided_slice %313 {offsets = [0, 32], sizes = [2, 16], strides = [1, 1]} : vector<2x64xf32> to vector<2x16xf32>
    %325 = vector.extract_strided_slice %313 {offsets = [0, 48], sizes = [2, 16], strides = [1, 1]} : vector<2x64xf32> to vector<2x16xf32>
    %cst_24 = arith.constant 5.000000e-01 : f32
    %326 = vector.broadcast %cst_24 : f32 to vector<2x16xf32>
    %327 = arith.mulf %326, %325 : vector<2x16xf32>
    %cst_25 = arith.constant 5.000000e-01 : f32
    %328 = vector.broadcast %cst_25 : f32 to vector<2x16xf32>
    %329 = arith.addf %327, %328 : vector<2x16xf32>
    %330 = arith.mulf %323, %229 : vector<2x16xf32>
    %331 = arith.mulf %318, %324 : vector<2x16xf32>
    %332 = arith.addf %330, %331 : vector<2x16xf32>
    %333 = math.tanh %332 : vector<2x16xf32>
    %334 = arith.mulf %329, %333 : vector<2x16xf32>
    %335 = vector.extract_strided_slice %334 {offsets = [0, 0], sizes = [2, 1], strides = [1, 1]} : vector<2x16xf32> to vector<2x1xf32>
    %336 = vector.broadcast %335 : vector<2x1xf32> to vector<2x64xf32>
    %337 = vector.broadcast %10 : vector<1x64xf32> to vector<2x64xf32>
    %338 = arith.mulf %336, %337 : vector<2x64xf32>
    %339 = vector.extract_strided_slice %334 {offsets = [0, 1], sizes = [2, 1], strides = [1, 1]} : vector<2x16xf32> to vector<2x1xf32>
    %340 = vector.broadcast %339 : vector<2x1xf32> to vector<2x64xf32>
    %341 = vector.broadcast %11 : vector<1x64xf32> to vector<2x64xf32>
    %342 = arith.mulf %340, %341 : vector<2x64xf32>
    %343 = vector.extract_strided_slice %334 {offsets = [0, 2], sizes = [2, 1], strides = [1, 1]} : vector<2x16xf32> to vector<2x1xf32>
    %344 = vector.broadcast %343 : vector<2x1xf32> to vector<2x64xf32>
    %345 = vector.broadcast %12 : vector<1x64xf32> to vector<2x64xf32>
    %346 = arith.mulf %344, %345 : vector<2x64xf32>
    %347 = vector.extract_strided_slice %334 {offsets = [0, 3], sizes = [2, 1], strides = [1, 1]} : vector<2x16xf32> to vector<2x1xf32>
    %348 = vector.broadcast %347 : vector<2x1xf32> to vector<2x64xf32>
    %349 = vector.broadcast %13 : vector<1x64xf32> to vector<2x64xf32>
    %350 = arith.mulf %348, %349 : vector<2x64xf32>
    %351 = vector.extract_strided_slice %334 {offsets = [0, 4], sizes = [2, 1], strides = [1, 1]} : vector<2x16xf32> to vector<2x1xf32>
    %352 = vector.broadcast %351 : vector<2x1xf32> to vector<2x64xf32>
    %353 = vector.broadcast %14 : vector<1x64xf32> to vector<2x64xf32>
    %354 = arith.mulf %352, %353 : vector<2x64xf32>
    %355 = vector.extract_strided_slice %334 {offsets = [0, 5], sizes = [2, 1], strides = [1, 1]} : vector<2x16xf32> to vector<2x1xf32>
    %356 = vector.broadcast %355 : vector<2x1xf32> to vector<2x64xf32>
    %357 = vector.broadcast %15 : vector<1x64xf32> to vector<2x64xf32>
    %358 = arith.mulf %356, %357 : vector<2x64xf32>
    %359 = vector.extract_strided_slice %334 {offsets = [0, 6], sizes = [2, 1], strides = [1, 1]} : vector<2x16xf32> to vector<2x1xf32>
    %360 = vector.broadcast %359 : vector<2x1xf32> to vector<2x64xf32>
    %361 = vector.broadcast %16 : vector<1x64xf32> to vector<2x64xf32>
    %362 = arith.mulf %360, %361 : vector<2x64xf32>
    %363 = vector.extract_strided_slice %334 {offsets = [0, 7], sizes = [2, 1], strides = [1, 1]} : vector<2x16xf32> to vector<2x1xf32>
    %364 = vector.broadcast %363 : vector<2x1xf32> to vector<2x64xf32>
    %365 = vector.broadcast %17 : vector<1x64xf32> to vector<2x64xf32>
    %366 = arith.mulf %364, %365 : vector<2x64xf32>
    %367 = vector.extract_strided_slice %334 {offsets = [0, 8], sizes = [2, 1], strides = [1, 1]} : vector<2x16xf32> to vector<2x1xf32>
    %368 = vector.broadcast %367 : vector<2x1xf32> to vector<2x64xf32>
    %369 = vector.broadcast %18 : vector<1x64xf32> to vector<2x64xf32>
    %370 = arith.mulf %368, %369 : vector<2x64xf32>
    %371 = vector.extract_strided_slice %334 {offsets = [0, 9], sizes = [2, 1], strides = [1, 1]} : vector<2x16xf32> to vector<2x1xf32>
    %372 = vector.broadcast %371 : vector<2x1xf32> to vector<2x64xf32>
    %373 = vector.broadcast %19 : vector<1x64xf32> to vector<2x64xf32>
    %374 = arith.mulf %372, %373 : vector<2x64xf32>
    %375 = vector.extract_strided_slice %334 {offsets = [0, 10], sizes = [2, 1], strides = [1, 1]} : vector<2x16xf32> to vector<2x1xf32>
    %376 = vector.broadcast %375 : vector<2x1xf32> to vector<2x64xf32>
    %377 = vector.broadcast %20 : vector<1x64xf32> to vector<2x64xf32>
    %378 = arith.mulf %376, %377 : vector<2x64xf32>
    %379 = vector.extract_strided_slice %334 {offsets = [0, 11], sizes = [2, 1], strides = [1, 1]} : vector<2x16xf32> to vector<2x1xf32>
    %380 = vector.broadcast %379 : vector<2x1xf32> to vector<2x64xf32>
    %381 = vector.broadcast %21 : vector<1x64xf32> to vector<2x64xf32>
    %382 = arith.mulf %380, %381 : vector<2x64xf32>
    %383 = vector.extract_strided_slice %334 {offsets = [0, 12], sizes = [2, 1], strides = [1, 1]} : vector<2x16xf32> to vector<2x1xf32>
    %384 = vector.broadcast %383 : vector<2x1xf32> to vector<2x64xf32>
    %385 = vector.broadcast %22 : vector<1x64xf32> to vector<2x64xf32>
    %386 = arith.mulf %384, %385 : vector<2x64xf32>
    %387 = vector.extract_strided_slice %334 {offsets = [0, 13], sizes = [2, 1], strides = [1, 1]} : vector<2x16xf32> to vector<2x1xf32>
    %388 = vector.broadcast %387 : vector<2x1xf32> to vector<2x64xf32>
    %389 = vector.broadcast %23 : vector<1x64xf32> to vector<2x64xf32>
    %390 = arith.mulf %388, %389 : vector<2x64xf32>
    %391 = vector.extract_strided_slice %334 {offsets = [0, 14], sizes = [2, 1], strides = [1, 1]} : vector<2x16xf32> to vector<2x1xf32>
    %392 = vector.broadcast %391 : vector<2x1xf32> to vector<2x64xf32>
    %393 = vector.broadcast %24 : vector<1x64xf32> to vector<2x64xf32>
    %394 = arith.mulf %392, %393 : vector<2x64xf32>
    %395 = vector.extract_strided_slice %334 {offsets = [0, 15], sizes = [2, 1], strides = [1, 1]} : vector<2x16xf32> to vector<2x1xf32>
    %396 = vector.broadcast %395 : vector<2x1xf32> to vector<2x64xf32>
    %397 = vector.broadcast %25 : vector<1x64xf32> to vector<2x64xf32>
    %398 = arith.mulf %396, %397 : vector<2x64xf32>
    %399 = arith.addf %338, %342 : vector<2x64xf32>
    %400 = arith.addf %346, %350 : vector<2x64xf32>
    %401 = arith.addf %354, %358 : vector<2x64xf32>
    %402 = arith.addf %362, %366 : vector<2x64xf32>
    %403 = arith.addf %370, %374 : vector<2x64xf32>
    %404 = arith.addf %378, %382 : vector<2x64xf32>
    %405 = arith.addf %386, %390 : vector<2x64xf32>
    %406 = arith.addf %394, %398 : vector<2x64xf32>
    %407 = arith.addf %399, %400 : vector<2x64xf32>
    %408 = arith.addf %401, %402 : vector<2x64xf32>
    %409 = arith.addf %403, %404 : vector<2x64xf32>
    %410 = arith.addf %405, %406 : vector<2x64xf32>
    %411 = arith.addf %407, %408 : vector<2x64xf32>
    %412 = arith.addf %409, %410 : vector<2x64xf32>
    %413 = arith.addf %411, %412 : vector<2x64xf32>
    %414 = vector.extract_strided_slice %8 {offsets = [6, 0], sizes = [2, 64], strides = [1, 1]} : vector<16x64xf32> to vector<2x64xf32>
    %415 = arith.addf %414, %413 : vector<2x64xf32>
    %416 = math.tanh %415 : vector<2x64xf32>
    %417 = vector.extract_strided_slice %416 {offsets = [0, 0], sizes = [2, 16], strides = [1, 1]} : vector<2x64xf32> to vector<2x16xf32>
    %cst_26 = arith.constant 5.000000e-01 : f32
    %418 = vector.broadcast %cst_26 : f32 to vector<2x16xf32>
    %419 = arith.mulf %418, %417 : vector<2x16xf32>
    %cst_27 = arith.constant 5.000000e-01 : f32
    %420 = vector.broadcast %cst_27 : f32 to vector<2x16xf32>
    %421 = arith.addf %419, %420 : vector<2x16xf32>
    %422 = vector.extract_strided_slice %416 {offsets = [0, 16], sizes = [2, 16], strides = [1, 1]} : vector<2x64xf32> to vector<2x16xf32>
    %cst_28 = arith.constant 5.000000e-01 : f32
    %423 = vector.broadcast %cst_28 : f32 to vector<2x16xf32>
    %424 = arith.mulf %423, %422 : vector<2x16xf32>
    %cst_29 = arith.constant 5.000000e-01 : f32
    %425 = vector.broadcast %cst_29 : f32 to vector<2x16xf32>
    %426 = arith.addf %424, %425 : vector<2x16xf32>
    %427 = vector.extract_strided_slice %416 {offsets = [0, 32], sizes = [2, 16], strides = [1, 1]} : vector<2x64xf32> to vector<2x16xf32>
    %428 = vector.extract_strided_slice %416 {offsets = [0, 48], sizes = [2, 16], strides = [1, 1]} : vector<2x64xf32> to vector<2x16xf32>
    %cst_30 = arith.constant 5.000000e-01 : f32
    %429 = vector.broadcast %cst_30 : f32 to vector<2x16xf32>
    %430 = arith.mulf %429, %428 : vector<2x16xf32>
    %cst_31 = arith.constant 5.000000e-01 : f32
    %431 = vector.broadcast %cst_31 : f32 to vector<2x16xf32>
    %432 = arith.addf %430, %431 : vector<2x16xf32>
    %433 = arith.mulf %426, %332 : vector<2x16xf32>
    %434 = arith.mulf %421, %427 : vector<2x16xf32>
    %435 = arith.addf %433, %434 : vector<2x16xf32>
    %436 = math.tanh %435 : vector<2x16xf32>
    %437 = arith.mulf %432, %436 : vector<2x16xf32>
    %438 = vector.extract_strided_slice %437 {offsets = [0, 0], sizes = [2, 1], strides = [1, 1]} : vector<2x16xf32> to vector<2x1xf32>
    %439 = vector.broadcast %438 : vector<2x1xf32> to vector<2x64xf32>
    %440 = vector.broadcast %10 : vector<1x64xf32> to vector<2x64xf32>
    %441 = arith.mulf %439, %440 : vector<2x64xf32>
    %442 = vector.extract_strided_slice %437 {offsets = [0, 1], sizes = [2, 1], strides = [1, 1]} : vector<2x16xf32> to vector<2x1xf32>
    %443 = vector.broadcast %442 : vector<2x1xf32> to vector<2x64xf32>
    %444 = vector.broadcast %11 : vector<1x64xf32> to vector<2x64xf32>
    %445 = arith.mulf %443, %444 : vector<2x64xf32>
    %446 = vector.extract_strided_slice %437 {offsets = [0, 2], sizes = [2, 1], strides = [1, 1]} : vector<2x16xf32> to vector<2x1xf32>
    %447 = vector.broadcast %446 : vector<2x1xf32> to vector<2x64xf32>
    %448 = vector.broadcast %12 : vector<1x64xf32> to vector<2x64xf32>
    %449 = arith.mulf %447, %448 : vector<2x64xf32>
    %450 = vector.extract_strided_slice %437 {offsets = [0, 3], sizes = [2, 1], strides = [1, 1]} : vector<2x16xf32> to vector<2x1xf32>
    %451 = vector.broadcast %450 : vector<2x1xf32> to vector<2x64xf32>
    %452 = vector.broadcast %13 : vector<1x64xf32> to vector<2x64xf32>
    %453 = arith.mulf %451, %452 : vector<2x64xf32>
    %454 = vector.extract_strided_slice %437 {offsets = [0, 4], sizes = [2, 1], strides = [1, 1]} : vector<2x16xf32> to vector<2x1xf32>
    %455 = vector.broadcast %454 : vector<2x1xf32> to vector<2x64xf32>
    %456 = vector.broadcast %14 : vector<1x64xf32> to vector<2x64xf32>
    %457 = arith.mulf %455, %456 : vector<2x64xf32>
    %458 = vector.extract_strided_slice %437 {offsets = [0, 5], sizes = [2, 1], strides = [1, 1]} : vector<2x16xf32> to vector<2x1xf32>
    %459 = vector.broadcast %458 : vector<2x1xf32> to vector<2x64xf32>
    %460 = vector.broadcast %15 : vector<1x64xf32> to vector<2x64xf32>
    %461 = arith.mulf %459, %460 : vector<2x64xf32>
    %462 = vector.extract_strided_slice %437 {offsets = [0, 6], sizes = [2, 1], strides = [1, 1]} : vector<2x16xf32> to vector<2x1xf32>
    %463 = vector.broadcast %462 : vector<2x1xf32> to vector<2x64xf32>
    %464 = vector.broadcast %16 : vector<1x64xf32> to vector<2x64xf32>
    %465 = arith.mulf %463, %464 : vector<2x64xf32>
    %466 = vector.extract_strided_slice %437 {offsets = [0, 7], sizes = [2, 1], strides = [1, 1]} : vector<2x16xf32> to vector<2x1xf32>
    %467 = vector.broadcast %466 : vector<2x1xf32> to vector<2x64xf32>
    %468 = vector.broadcast %17 : vector<1x64xf32> to vector<2x64xf32>
    %469 = arith.mulf %467, %468 : vector<2x64xf32>
    %470 = vector.extract_strided_slice %437 {offsets = [0, 8], sizes = [2, 1], strides = [1, 1]} : vector<2x16xf32> to vector<2x1xf32>
    %471 = vector.broadcast %470 : vector<2x1xf32> to vector<2x64xf32>
    %472 = vector.broadcast %18 : vector<1x64xf32> to vector<2x64xf32>
    %473 = arith.mulf %471, %472 : vector<2x64xf32>
    %474 = vector.extract_strided_slice %437 {offsets = [0, 9], sizes = [2, 1], strides = [1, 1]} : vector<2x16xf32> to vector<2x1xf32>
    %475 = vector.broadcast %474 : vector<2x1xf32> to vector<2x64xf32>
    %476 = vector.broadcast %19 : vector<1x64xf32> to vector<2x64xf32>
    %477 = arith.mulf %475, %476 : vector<2x64xf32>
    %478 = vector.extract_strided_slice %437 {offsets = [0, 10], sizes = [2, 1], strides = [1, 1]} : vector<2x16xf32> to vector<2x1xf32>
    %479 = vector.broadcast %478 : vector<2x1xf32> to vector<2x64xf32>
    %480 = vector.broadcast %20 : vector<1x64xf32> to vector<2x64xf32>
    %481 = arith.mulf %479, %480 : vector<2x64xf32>
    %482 = vector.extract_strided_slice %437 {offsets = [0, 11], sizes = [2, 1], strides = [1, 1]} : vector<2x16xf32> to vector<2x1xf32>
    %483 = vector.broadcast %482 : vector<2x1xf32> to vector<2x64xf32>
    %484 = vector.broadcast %21 : vector<1x64xf32> to vector<2x64xf32>
    %485 = arith.mulf %483, %484 : vector<2x64xf32>
    %486 = vector.extract_strided_slice %437 {offsets = [0, 12], sizes = [2, 1], strides = [1, 1]} : vector<2x16xf32> to vector<2x1xf32>
    %487 = vector.broadcast %486 : vector<2x1xf32> to vector<2x64xf32>
    %488 = vector.broadcast %22 : vector<1x64xf32> to vector<2x64xf32>
    %489 = arith.mulf %487, %488 : vector<2x64xf32>
    %490 = vector.extract_strided_slice %437 {offsets = [0, 13], sizes = [2, 1], strides = [1, 1]} : vector<2x16xf32> to vector<2x1xf32>
    %491 = vector.broadcast %490 : vector<2x1xf32> to vector<2x64xf32>
    %492 = vector.broadcast %23 : vector<1x64xf32> to vector<2x64xf32>
    %493 = arith.mulf %491, %492 : vector<2x64xf32>
    %494 = vector.extract_strided_slice %437 {offsets = [0, 14], sizes = [2, 1], strides = [1, 1]} : vector<2x16xf32> to vector<2x1xf32>
    %495 = vector.broadcast %494 : vector<2x1xf32> to vector<2x64xf32>
    %496 = vector.broadcast %24 : vector<1x64xf32> to vector<2x64xf32>
    %497 = arith.mulf %495, %496 : vector<2x64xf32>
    %498 = vector.extract_strided_slice %437 {offsets = [0, 15], sizes = [2, 1], strides = [1, 1]} : vector<2x16xf32> to vector<2x1xf32>
    %499 = vector.broadcast %498 : vector<2x1xf32> to vector<2x64xf32>
    %500 = vector.broadcast %25 : vector<1x64xf32> to vector<2x64xf32>
    %501 = arith.mulf %499, %500 : vector<2x64xf32>
    %502 = arith.addf %441, %445 : vector<2x64xf32>
    %503 = arith.addf %449, %453 : vector<2x64xf32>
    %504 = arith.addf %457, %461 : vector<2x64xf32>
    %505 = arith.addf %465, %469 : vector<2x64xf32>
    %506 = arith.addf %473, %477 : vector<2x64xf32>
    %507 = arith.addf %481, %485 : vector<2x64xf32>
    %508 = arith.addf %489, %493 : vector<2x64xf32>
    %509 = arith.addf %497, %501 : vector<2x64xf32>
    %510 = arith.addf %502, %503 : vector<2x64xf32>
    %511 = arith.addf %504, %505 : vector<2x64xf32>
    %512 = arith.addf %506, %507 : vector<2x64xf32>
    %513 = arith.addf %508, %509 : vector<2x64xf32>
    %514 = arith.addf %510, %511 : vector<2x64xf32>
    %515 = arith.addf %512, %513 : vector<2x64xf32>
    %516 = arith.addf %514, %515 : vector<2x64xf32>
    %517 = vector.extract_strided_slice %8 {offsets = [8, 0], sizes = [2, 64], strides = [1, 1]} : vector<16x64xf32> to vector<2x64xf32>
    %518 = arith.addf %517, %516 : vector<2x64xf32>
    %519 = math.tanh %518 : vector<2x64xf32>
    %520 = vector.extract_strided_slice %519 {offsets = [0, 0], sizes = [2, 16], strides = [1, 1]} : vector<2x64xf32> to vector<2x16xf32>
    %cst_32 = arith.constant 5.000000e-01 : f32
    %521 = vector.broadcast %cst_32 : f32 to vector<2x16xf32>
    %522 = arith.mulf %521, %520 : vector<2x16xf32>
    %cst_33 = arith.constant 5.000000e-01 : f32
    %523 = vector.broadcast %cst_33 : f32 to vector<2x16xf32>
    %524 = arith.addf %522, %523 : vector<2x16xf32>
    %525 = vector.extract_strided_slice %519 {offsets = [0, 16], sizes = [2, 16], strides = [1, 1]} : vector<2x64xf32> to vector<2x16xf32>
    %cst_34 = arith.constant 5.000000e-01 : f32
    %526 = vector.broadcast %cst_34 : f32 to vector<2x16xf32>
    %527 = arith.mulf %526, %525 : vector<2x16xf32>
    %cst_35 = arith.constant 5.000000e-01 : f32
    %528 = vector.broadcast %cst_35 : f32 to vector<2x16xf32>
    %529 = arith.addf %527, %528 : vector<2x16xf32>
    %530 = vector.extract_strided_slice %519 {offsets = [0, 32], sizes = [2, 16], strides = [1, 1]} : vector<2x64xf32> to vector<2x16xf32>
    %531 = vector.extract_strided_slice %519 {offsets = [0, 48], sizes = [2, 16], strides = [1, 1]} : vector<2x64xf32> to vector<2x16xf32>
    %cst_36 = arith.constant 5.000000e-01 : f32
    %532 = vector.broadcast %cst_36 : f32 to vector<2x16xf32>
    %533 = arith.mulf %532, %531 : vector<2x16xf32>
    %cst_37 = arith.constant 5.000000e-01 : f32
    %534 = vector.broadcast %cst_37 : f32 to vector<2x16xf32>
    %535 = arith.addf %533, %534 : vector<2x16xf32>
    %536 = arith.mulf %529, %435 : vector<2x16xf32>
    %537 = arith.mulf %524, %530 : vector<2x16xf32>
    %538 = arith.addf %536, %537 : vector<2x16xf32>
    %539 = math.tanh %538 : vector<2x16xf32>
    %540 = arith.mulf %535, %539 : vector<2x16xf32>
    %541 = vector.extract_strided_slice %540 {offsets = [0, 0], sizes = [2, 1], strides = [1, 1]} : vector<2x16xf32> to vector<2x1xf32>
    %542 = vector.broadcast %541 : vector<2x1xf32> to vector<2x64xf32>
    %543 = vector.broadcast %10 : vector<1x64xf32> to vector<2x64xf32>
    %544 = arith.mulf %542, %543 : vector<2x64xf32>
    %545 = vector.extract_strided_slice %540 {offsets = [0, 1], sizes = [2, 1], strides = [1, 1]} : vector<2x16xf32> to vector<2x1xf32>
    %546 = vector.broadcast %545 : vector<2x1xf32> to vector<2x64xf32>
    %547 = vector.broadcast %11 : vector<1x64xf32> to vector<2x64xf32>
    %548 = arith.mulf %546, %547 : vector<2x64xf32>
    %549 = vector.extract_strided_slice %540 {offsets = [0, 2], sizes = [2, 1], strides = [1, 1]} : vector<2x16xf32> to vector<2x1xf32>
    %550 = vector.broadcast %549 : vector<2x1xf32> to vector<2x64xf32>
    %551 = vector.broadcast %12 : vector<1x64xf32> to vector<2x64xf32>
    %552 = arith.mulf %550, %551 : vector<2x64xf32>
    %553 = vector.extract_strided_slice %540 {offsets = [0, 3], sizes = [2, 1], strides = [1, 1]} : vector<2x16xf32> to vector<2x1xf32>
    %554 = vector.broadcast %553 : vector<2x1xf32> to vector<2x64xf32>
    %555 = vector.broadcast %13 : vector<1x64xf32> to vector<2x64xf32>
    %556 = arith.mulf %554, %555 : vector<2x64xf32>
    %557 = vector.extract_strided_slice %540 {offsets = [0, 4], sizes = [2, 1], strides = [1, 1]} : vector<2x16xf32> to vector<2x1xf32>
    %558 = vector.broadcast %557 : vector<2x1xf32> to vector<2x64xf32>
    %559 = vector.broadcast %14 : vector<1x64xf32> to vector<2x64xf32>
    %560 = arith.mulf %558, %559 : vector<2x64xf32>
    %561 = vector.extract_strided_slice %540 {offsets = [0, 5], sizes = [2, 1], strides = [1, 1]} : vector<2x16xf32> to vector<2x1xf32>
    %562 = vector.broadcast %561 : vector<2x1xf32> to vector<2x64xf32>
    %563 = vector.broadcast %15 : vector<1x64xf32> to vector<2x64xf32>
    %564 = arith.mulf %562, %563 : vector<2x64xf32>
    %565 = vector.extract_strided_slice %540 {offsets = [0, 6], sizes = [2, 1], strides = [1, 1]} : vector<2x16xf32> to vector<2x1xf32>
    %566 = vector.broadcast %565 : vector<2x1xf32> to vector<2x64xf32>
    %567 = vector.broadcast %16 : vector<1x64xf32> to vector<2x64xf32>
    %568 = arith.mulf %566, %567 : vector<2x64xf32>
    %569 = vector.extract_strided_slice %540 {offsets = [0, 7], sizes = [2, 1], strides = [1, 1]} : vector<2x16xf32> to vector<2x1xf32>
    %570 = vector.broadcast %569 : vector<2x1xf32> to vector<2x64xf32>
    %571 = vector.broadcast %17 : vector<1x64xf32> to vector<2x64xf32>
    %572 = arith.mulf %570, %571 : vector<2x64xf32>
    %573 = vector.extract_strided_slice %540 {offsets = [0, 8], sizes = [2, 1], strides = [1, 1]} : vector<2x16xf32> to vector<2x1xf32>
    %574 = vector.broadcast %573 : vector<2x1xf32> to vector<2x64xf32>
    %575 = vector.broadcast %18 : vector<1x64xf32> to vector<2x64xf32>
    %576 = arith.mulf %574, %575 : vector<2x64xf32>
    %577 = vector.extract_strided_slice %540 {offsets = [0, 9], sizes = [2, 1], strides = [1, 1]} : vector<2x16xf32> to vector<2x1xf32>
    %578 = vector.broadcast %577 : vector<2x1xf32> to vector<2x64xf32>
    %579 = vector.broadcast %19 : vector<1x64xf32> to vector<2x64xf32>
    %580 = arith.mulf %578, %579 : vector<2x64xf32>
    %581 = vector.extract_strided_slice %540 {offsets = [0, 10], sizes = [2, 1], strides = [1, 1]} : vector<2x16xf32> to vector<2x1xf32>
    %582 = vector.broadcast %581 : vector<2x1xf32> to vector<2x64xf32>
    %583 = vector.broadcast %20 : vector<1x64xf32> to vector<2x64xf32>
    %584 = arith.mulf %582, %583 : vector<2x64xf32>
    %585 = vector.extract_strided_slice %540 {offsets = [0, 11], sizes = [2, 1], strides = [1, 1]} : vector<2x16xf32> to vector<2x1xf32>
    %586 = vector.broadcast %585 : vector<2x1xf32> to vector<2x64xf32>
    %587 = vector.broadcast %21 : vector<1x64xf32> to vector<2x64xf32>
    %588 = arith.mulf %586, %587 : vector<2x64xf32>
    %589 = vector.extract_strided_slice %540 {offsets = [0, 12], sizes = [2, 1], strides = [1, 1]} : vector<2x16xf32> to vector<2x1xf32>
    %590 = vector.broadcast %589 : vector<2x1xf32> to vector<2x64xf32>
    %591 = vector.broadcast %22 : vector<1x64xf32> to vector<2x64xf32>
    %592 = arith.mulf %590, %591 : vector<2x64xf32>
    %593 = vector.extract_strided_slice %540 {offsets = [0, 13], sizes = [2, 1], strides = [1, 1]} : vector<2x16xf32> to vector<2x1xf32>
    %594 = vector.broadcast %593 : vector<2x1xf32> to vector<2x64xf32>
    %595 = vector.broadcast %23 : vector<1x64xf32> to vector<2x64xf32>
    %596 = arith.mulf %594, %595 : vector<2x64xf32>
    %597 = vector.extract_strided_slice %540 {offsets = [0, 14], sizes = [2, 1], strides = [1, 1]} : vector<2x16xf32> to vector<2x1xf32>
    %598 = vector.broadcast %597 : vector<2x1xf32> to vector<2x64xf32>
    %599 = vector.broadcast %24 : vector<1x64xf32> to vector<2x64xf32>
    %600 = arith.mulf %598, %599 : vector<2x64xf32>
    %601 = vector.extract_strided_slice %540 {offsets = [0, 15], sizes = [2, 1], strides = [1, 1]} : vector<2x16xf32> to vector<2x1xf32>
    %602 = vector.broadcast %601 : vector<2x1xf32> to vector<2x64xf32>
    %603 = vector.broadcast %25 : vector<1x64xf32> to vector<2x64xf32>
    %604 = arith.mulf %602, %603 : vector<2x64xf32>
    %605 = arith.addf %544, %548 : vector<2x64xf32>
    %606 = arith.addf %552, %556 : vector<2x64xf32>
    %607 = arith.addf %560, %564 : vector<2x64xf32>
    %608 = arith.addf %568, %572 : vector<2x64xf32>
    %609 = arith.addf %576, %580 : vector<2x64xf32>
    %610 = arith.addf %584, %588 : vector<2x64xf32>
    %611 = arith.addf %592, %596 : vector<2x64xf32>
    %612 = arith.addf %600, %604 : vector<2x64xf32>
    %613 = arith.addf %605, %606 : vector<2x64xf32>
    %614 = arith.addf %607, %608 : vector<2x64xf32>
    %615 = arith.addf %609, %610 : vector<2x64xf32>
    %616 = arith.addf %611, %612 : vector<2x64xf32>
    %617 = arith.addf %613, %614 : vector<2x64xf32>
    %618 = arith.addf %615, %616 : vector<2x64xf32>
    %619 = arith.addf %617, %618 : vector<2x64xf32>
    %620 = vector.extract_strided_slice %8 {offsets = [10, 0], sizes = [2, 64], strides = [1, 1]} : vector<16x64xf32> to vector<2x64xf32>
    %621 = arith.addf %620, %619 : vector<2x64xf32>
    %622 = math.tanh %621 : vector<2x64xf32>
    %623 = vector.extract_strided_slice %622 {offsets = [0, 0], sizes = [2, 16], strides = [1, 1]} : vector<2x64xf32> to vector<2x16xf32>
    %cst_38 = arith.constant 5.000000e-01 : f32
    %624 = vector.broadcast %cst_38 : f32 to vector<2x16xf32>
    %625 = arith.mulf %624, %623 : vector<2x16xf32>
    %cst_39 = arith.constant 5.000000e-01 : f32
    %626 = vector.broadcast %cst_39 : f32 to vector<2x16xf32>
    %627 = arith.addf %625, %626 : vector<2x16xf32>
    %628 = vector.extract_strided_slice %622 {offsets = [0, 16], sizes = [2, 16], strides = [1, 1]} : vector<2x64xf32> to vector<2x16xf32>
    %cst_40 = arith.constant 5.000000e-01 : f32
    %629 = vector.broadcast %cst_40 : f32 to vector<2x16xf32>
    %630 = arith.mulf %629, %628 : vector<2x16xf32>
    %cst_41 = arith.constant 5.000000e-01 : f32
    %631 = vector.broadcast %cst_41 : f32 to vector<2x16xf32>
    %632 = arith.addf %630, %631 : vector<2x16xf32>
    %633 = vector.extract_strided_slice %622 {offsets = [0, 32], sizes = [2, 16], strides = [1, 1]} : vector<2x64xf32> to vector<2x16xf32>
    %634 = vector.extract_strided_slice %622 {offsets = [0, 48], sizes = [2, 16], strides = [1, 1]} : vector<2x64xf32> to vector<2x16xf32>
    %cst_42 = arith.constant 5.000000e-01 : f32
    %635 = vector.broadcast %cst_42 : f32 to vector<2x16xf32>
    %636 = arith.mulf %635, %634 : vector<2x16xf32>
    %cst_43 = arith.constant 5.000000e-01 : f32
    %637 = vector.broadcast %cst_43 : f32 to vector<2x16xf32>
    %638 = arith.addf %636, %637 : vector<2x16xf32>
    %639 = arith.mulf %632, %538 : vector<2x16xf32>
    %640 = arith.mulf %627, %633 : vector<2x16xf32>
    %641 = arith.addf %639, %640 : vector<2x16xf32>
    %642 = math.tanh %641 : vector<2x16xf32>
    %643 = arith.mulf %638, %642 : vector<2x16xf32>
    %644 = vector.extract_strided_slice %643 {offsets = [0, 0], sizes = [2, 1], strides = [1, 1]} : vector<2x16xf32> to vector<2x1xf32>
    %645 = vector.broadcast %644 : vector<2x1xf32> to vector<2x64xf32>
    %646 = vector.broadcast %10 : vector<1x64xf32> to vector<2x64xf32>
    %647 = arith.mulf %645, %646 : vector<2x64xf32>
    %648 = vector.extract_strided_slice %643 {offsets = [0, 1], sizes = [2, 1], strides = [1, 1]} : vector<2x16xf32> to vector<2x1xf32>
    %649 = vector.broadcast %648 : vector<2x1xf32> to vector<2x64xf32>
    %650 = vector.broadcast %11 : vector<1x64xf32> to vector<2x64xf32>
    %651 = arith.mulf %649, %650 : vector<2x64xf32>
    %652 = vector.extract_strided_slice %643 {offsets = [0, 2], sizes = [2, 1], strides = [1, 1]} : vector<2x16xf32> to vector<2x1xf32>
    %653 = vector.broadcast %652 : vector<2x1xf32> to vector<2x64xf32>
    %654 = vector.broadcast %12 : vector<1x64xf32> to vector<2x64xf32>
    %655 = arith.mulf %653, %654 : vector<2x64xf32>
    %656 = vector.extract_strided_slice %643 {offsets = [0, 3], sizes = [2, 1], strides = [1, 1]} : vector<2x16xf32> to vector<2x1xf32>
    %657 = vector.broadcast %656 : vector<2x1xf32> to vector<2x64xf32>
    %658 = vector.broadcast %13 : vector<1x64xf32> to vector<2x64xf32>
    %659 = arith.mulf %657, %658 : vector<2x64xf32>
    %660 = vector.extract_strided_slice %643 {offsets = [0, 4], sizes = [2, 1], strides = [1, 1]} : vector<2x16xf32> to vector<2x1xf32>
    %661 = vector.broadcast %660 : vector<2x1xf32> to vector<2x64xf32>
    %662 = vector.broadcast %14 : vector<1x64xf32> to vector<2x64xf32>
    %663 = arith.mulf %661, %662 : vector<2x64xf32>
    %664 = vector.extract_strided_slice %643 {offsets = [0, 5], sizes = [2, 1], strides = [1, 1]} : vector<2x16xf32> to vector<2x1xf32>
    %665 = vector.broadcast %664 : vector<2x1xf32> to vector<2x64xf32>
    %666 = vector.broadcast %15 : vector<1x64xf32> to vector<2x64xf32>
    %667 = arith.mulf %665, %666 : vector<2x64xf32>
    %668 = vector.extract_strided_slice %643 {offsets = [0, 6], sizes = [2, 1], strides = [1, 1]} : vector<2x16xf32> to vector<2x1xf32>
    %669 = vector.broadcast %668 : vector<2x1xf32> to vector<2x64xf32>
    %670 = vector.broadcast %16 : vector<1x64xf32> to vector<2x64xf32>
    %671 = arith.mulf %669, %670 : vector<2x64xf32>
    %672 = vector.extract_strided_slice %643 {offsets = [0, 7], sizes = [2, 1], strides = [1, 1]} : vector<2x16xf32> to vector<2x1xf32>
    %673 = vector.broadcast %672 : vector<2x1xf32> to vector<2x64xf32>
    %674 = vector.broadcast %17 : vector<1x64xf32> to vector<2x64xf32>
    %675 = arith.mulf %673, %674 : vector<2x64xf32>
    %676 = vector.extract_strided_slice %643 {offsets = [0, 8], sizes = [2, 1], strides = [1, 1]} : vector<2x16xf32> to vector<2x1xf32>
    %677 = vector.broadcast %676 : vector<2x1xf32> to vector<2x64xf32>
    %678 = vector.broadcast %18 : vector<1x64xf32> to vector<2x64xf32>
    %679 = arith.mulf %677, %678 : vector<2x64xf32>
    %680 = vector.extract_strided_slice %643 {offsets = [0, 9], sizes = [2, 1], strides = [1, 1]} : vector<2x16xf32> to vector<2x1xf32>
    %681 = vector.broadcast %680 : vector<2x1xf32> to vector<2x64xf32>
    %682 = vector.broadcast %19 : vector<1x64xf32> to vector<2x64xf32>
    %683 = arith.mulf %681, %682 : vector<2x64xf32>
    %684 = vector.extract_strided_slice %643 {offsets = [0, 10], sizes = [2, 1], strides = [1, 1]} : vector<2x16xf32> to vector<2x1xf32>
    %685 = vector.broadcast %684 : vector<2x1xf32> to vector<2x64xf32>
    %686 = vector.broadcast %20 : vector<1x64xf32> to vector<2x64xf32>
    %687 = arith.mulf %685, %686 : vector<2x64xf32>
    %688 = vector.extract_strided_slice %643 {offsets = [0, 11], sizes = [2, 1], strides = [1, 1]} : vector<2x16xf32> to vector<2x1xf32>
    %689 = vector.broadcast %688 : vector<2x1xf32> to vector<2x64xf32>
    %690 = vector.broadcast %21 : vector<1x64xf32> to vector<2x64xf32>
    %691 = arith.mulf %689, %690 : vector<2x64xf32>
    %692 = vector.extract_strided_slice %643 {offsets = [0, 12], sizes = [2, 1], strides = [1, 1]} : vector<2x16xf32> to vector<2x1xf32>
    %693 = vector.broadcast %692 : vector<2x1xf32> to vector<2x64xf32>
    %694 = vector.broadcast %22 : vector<1x64xf32> to vector<2x64xf32>
    %695 = arith.mulf %693, %694 : vector<2x64xf32>
    %696 = vector.extract_strided_slice %643 {offsets = [0, 13], sizes = [2, 1], strides = [1, 1]} : vector<2x16xf32> to vector<2x1xf32>
    %697 = vector.broadcast %696 : vector<2x1xf32> to vector<2x64xf32>
    %698 = vector.broadcast %23 : vector<1x64xf32> to vector<2x64xf32>
    %699 = arith.mulf %697, %698 : vector<2x64xf32>
    %700 = vector.extract_strided_slice %643 {offsets = [0, 14], sizes = [2, 1], strides = [1, 1]} : vector<2x16xf32> to vector<2x1xf32>
    %701 = vector.broadcast %700 : vector<2x1xf32> to vector<2x64xf32>
    %702 = vector.broadcast %24 : vector<1x64xf32> to vector<2x64xf32>
    %703 = arith.mulf %701, %702 : vector<2x64xf32>
    %704 = vector.extract_strided_slice %643 {offsets = [0, 15], sizes = [2, 1], strides = [1, 1]} : vector<2x16xf32> to vector<2x1xf32>
    %705 = vector.broadcast %704 : vector<2x1xf32> to vector<2x64xf32>
    %706 = vector.broadcast %25 : vector<1x64xf32> to vector<2x64xf32>
    %707 = arith.mulf %705, %706 : vector<2x64xf32>
    %708 = arith.addf %647, %651 : vector<2x64xf32>
    %709 = arith.addf %655, %659 : vector<2x64xf32>
    %710 = arith.addf %663, %667 : vector<2x64xf32>
    %711 = arith.addf %671, %675 : vector<2x64xf32>
    %712 = arith.addf %679, %683 : vector<2x64xf32>
    %713 = arith.addf %687, %691 : vector<2x64xf32>
    %714 = arith.addf %695, %699 : vector<2x64xf32>
    %715 = arith.addf %703, %707 : vector<2x64xf32>
    %716 = arith.addf %708, %709 : vector<2x64xf32>
    %717 = arith.addf %710, %711 : vector<2x64xf32>
    %718 = arith.addf %712, %713 : vector<2x64xf32>
    %719 = arith.addf %714, %715 : vector<2x64xf32>
    %720 = arith.addf %716, %717 : vector<2x64xf32>
    %721 = arith.addf %718, %719 : vector<2x64xf32>
    %722 = arith.addf %720, %721 : vector<2x64xf32>
    %723 = vector.extract_strided_slice %8 {offsets = [12, 0], sizes = [2, 64], strides = [1, 1]} : vector<16x64xf32> to vector<2x64xf32>
    %724 = arith.addf %723, %722 : vector<2x64xf32>
    %725 = math.tanh %724 : vector<2x64xf32>
    %726 = vector.extract_strided_slice %725 {offsets = [0, 0], sizes = [2, 16], strides = [1, 1]} : vector<2x64xf32> to vector<2x16xf32>
    %cst_44 = arith.constant 5.000000e-01 : f32
    %727 = vector.broadcast %cst_44 : f32 to vector<2x16xf32>
    %728 = arith.mulf %727, %726 : vector<2x16xf32>
    %cst_45 = arith.constant 5.000000e-01 : f32
    %729 = vector.broadcast %cst_45 : f32 to vector<2x16xf32>
    %730 = arith.addf %728, %729 : vector<2x16xf32>
    %731 = vector.extract_strided_slice %725 {offsets = [0, 16], sizes = [2, 16], strides = [1, 1]} : vector<2x64xf32> to vector<2x16xf32>
    %cst_46 = arith.constant 5.000000e-01 : f32
    %732 = vector.broadcast %cst_46 : f32 to vector<2x16xf32>
    %733 = arith.mulf %732, %731 : vector<2x16xf32>
    %cst_47 = arith.constant 5.000000e-01 : f32
    %734 = vector.broadcast %cst_47 : f32 to vector<2x16xf32>
    %735 = arith.addf %733, %734 : vector<2x16xf32>
    %736 = vector.extract_strided_slice %725 {offsets = [0, 32], sizes = [2, 16], strides = [1, 1]} : vector<2x64xf32> to vector<2x16xf32>
    %737 = vector.extract_strided_slice %725 {offsets = [0, 48], sizes = [2, 16], strides = [1, 1]} : vector<2x64xf32> to vector<2x16xf32>
    %cst_48 = arith.constant 5.000000e-01 : f32
    %738 = vector.broadcast %cst_48 : f32 to vector<2x16xf32>
    %739 = arith.mulf %738, %737 : vector<2x16xf32>
    %cst_49 = arith.constant 5.000000e-01 : f32
    %740 = vector.broadcast %cst_49 : f32 to vector<2x16xf32>
    %741 = arith.addf %739, %740 : vector<2x16xf32>
    %742 = arith.mulf %735, %641 : vector<2x16xf32>
    %743 = arith.mulf %730, %736 : vector<2x16xf32>
    %744 = arith.addf %742, %743 : vector<2x16xf32>
    %745 = math.tanh %744 : vector<2x16xf32>
    %746 = arith.mulf %741, %745 : vector<2x16xf32>
    %c0_i32 = arith.constant 0 : i32
    %747 = vector.broadcast %c0_i32 : i32 to vector<2x16xi32>
    %748 = arith.cmpi eq, %9, %747 : vector<2x16xi32>
    %749 = arith.select %748, %746, %643 : vector<2x16xi1>, vector<2x16xf32>
    %750 = arith.select %748, %744, %641 : vector<2x16xi1>, vector<2x16xf32>
    %751 = vector.extract_strided_slice %749 {offsets = [0, 0], sizes = [2, 1], strides = [1, 1]} : vector<2x16xf32> to vector<2x1xf32>
    %752 = vector.broadcast %751 : vector<2x1xf32> to vector<2x64xf32>
    %753 = vector.broadcast %10 : vector<1x64xf32> to vector<2x64xf32>
    %754 = arith.mulf %752, %753 : vector<2x64xf32>
    %755 = vector.extract_strided_slice %749 {offsets = [0, 1], sizes = [2, 1], strides = [1, 1]} : vector<2x16xf32> to vector<2x1xf32>
    %756 = vector.broadcast %755 : vector<2x1xf32> to vector<2x64xf32>
    %757 = vector.broadcast %11 : vector<1x64xf32> to vector<2x64xf32>
    %758 = arith.mulf %756, %757 : vector<2x64xf32>
    %759 = vector.extract_strided_slice %749 {offsets = [0, 2], sizes = [2, 1], strides = [1, 1]} : vector<2x16xf32> to vector<2x1xf32>
    %760 = vector.broadcast %759 : vector<2x1xf32> to vector<2x64xf32>
    %761 = vector.broadcast %12 : vector<1x64xf32> to vector<2x64xf32>
    %762 = arith.mulf %760, %761 : vector<2x64xf32>
    %763 = vector.extract_strided_slice %749 {offsets = [0, 3], sizes = [2, 1], strides = [1, 1]} : vector<2x16xf32> to vector<2x1xf32>
    %764 = vector.broadcast %763 : vector<2x1xf32> to vector<2x64xf32>
    %765 = vector.broadcast %13 : vector<1x64xf32> to vector<2x64xf32>
    %766 = arith.mulf %764, %765 : vector<2x64xf32>
    %767 = vector.extract_strided_slice %749 {offsets = [0, 4], sizes = [2, 1], strides = [1, 1]} : vector<2x16xf32> to vector<2x1xf32>
    %768 = vector.broadcast %767 : vector<2x1xf32> to vector<2x64xf32>
    %769 = vector.broadcast %14 : vector<1x64xf32> to vector<2x64xf32>
    %770 = arith.mulf %768, %769 : vector<2x64xf32>
    %771 = vector.extract_strided_slice %749 {offsets = [0, 5], sizes = [2, 1], strides = [1, 1]} : vector<2x16xf32> to vector<2x1xf32>
    %772 = vector.broadcast %771 : vector<2x1xf32> to vector<2x64xf32>
    %773 = vector.broadcast %15 : vector<1x64xf32> to vector<2x64xf32>
    %774 = arith.mulf %772, %773 : vector<2x64xf32>
    %775 = vector.extract_strided_slice %749 {offsets = [0, 6], sizes = [2, 1], strides = [1, 1]} : vector<2x16xf32> to vector<2x1xf32>
    %776 = vector.broadcast %775 : vector<2x1xf32> to vector<2x64xf32>
    %777 = vector.broadcast %16 : vector<1x64xf32> to vector<2x64xf32>
    %778 = arith.mulf %776, %777 : vector<2x64xf32>
    %779 = vector.extract_strided_slice %749 {offsets = [0, 7], sizes = [2, 1], strides = [1, 1]} : vector<2x16xf32> to vector<2x1xf32>
    %780 = vector.broadcast %779 : vector<2x1xf32> to vector<2x64xf32>
    %781 = vector.broadcast %17 : vector<1x64xf32> to vector<2x64xf32>
    %782 = arith.mulf %780, %781 : vector<2x64xf32>
    %783 = vector.extract_strided_slice %749 {offsets = [0, 8], sizes = [2, 1], strides = [1, 1]} : vector<2x16xf32> to vector<2x1xf32>
    %784 = vector.broadcast %783 : vector<2x1xf32> to vector<2x64xf32>
    %785 = vector.broadcast %18 : vector<1x64xf32> to vector<2x64xf32>
    %786 = arith.mulf %784, %785 : vector<2x64xf32>
    %787 = vector.extract_strided_slice %749 {offsets = [0, 9], sizes = [2, 1], strides = [1, 1]} : vector<2x16xf32> to vector<2x1xf32>
    %788 = vector.broadcast %787 : vector<2x1xf32> to vector<2x64xf32>
    %789 = vector.broadcast %19 : vector<1x64xf32> to vector<2x64xf32>
    %790 = arith.mulf %788, %789 : vector<2x64xf32>
    %791 = vector.extract_strided_slice %749 {offsets = [0, 10], sizes = [2, 1], strides = [1, 1]} : vector<2x16xf32> to vector<2x1xf32>
    %792 = vector.broadcast %791 : vector<2x1xf32> to vector<2x64xf32>
    %793 = vector.broadcast %20 : vector<1x64xf32> to vector<2x64xf32>
    %794 = arith.mulf %792, %793 : vector<2x64xf32>
    %795 = vector.extract_strided_slice %749 {offsets = [0, 11], sizes = [2, 1], strides = [1, 1]} : vector<2x16xf32> to vector<2x1xf32>
    %796 = vector.broadcast %795 : vector<2x1xf32> to vector<2x64xf32>
    %797 = vector.broadcast %21 : vector<1x64xf32> to vector<2x64xf32>
    %798 = arith.mulf %796, %797 : vector<2x64xf32>
    %799 = vector.extract_strided_slice %749 {offsets = [0, 12], sizes = [2, 1], strides = [1, 1]} : vector<2x16xf32> to vector<2x1xf32>
    %800 = vector.broadcast %799 : vector<2x1xf32> to vector<2x64xf32>
    %801 = vector.broadcast %22 : vector<1x64xf32> to vector<2x64xf32>
    %802 = arith.mulf %800, %801 : vector<2x64xf32>
    %803 = vector.extract_strided_slice %749 {offsets = [0, 13], sizes = [2, 1], strides = [1, 1]} : vector<2x16xf32> to vector<2x1xf32>
    %804 = vector.broadcast %803 : vector<2x1xf32> to vector<2x64xf32>
    %805 = vector.broadcast %23 : vector<1x64xf32> to vector<2x64xf32>
    %806 = arith.mulf %804, %805 : vector<2x64xf32>
    %807 = vector.extract_strided_slice %749 {offsets = [0, 14], sizes = [2, 1], strides = [1, 1]} : vector<2x16xf32> to vector<2x1xf32>
    %808 = vector.broadcast %807 : vector<2x1xf32> to vector<2x64xf32>
    %809 = vector.broadcast %24 : vector<1x64xf32> to vector<2x64xf32>
    %810 = arith.mulf %808, %809 : vector<2x64xf32>
    %811 = vector.extract_strided_slice %749 {offsets = [0, 15], sizes = [2, 1], strides = [1, 1]} : vector<2x16xf32> to vector<2x1xf32>
    %812 = vector.broadcast %811 : vector<2x1xf32> to vector<2x64xf32>
    %813 = vector.broadcast %25 : vector<1x64xf32> to vector<2x64xf32>
    %814 = arith.mulf %812, %813 : vector<2x64xf32>
    %815 = arith.addf %754, %758 : vector<2x64xf32>
    %816 = arith.addf %762, %766 : vector<2x64xf32>
    %817 = arith.addf %770, %774 : vector<2x64xf32>
    %818 = arith.addf %778, %782 : vector<2x64xf32>
    %819 = arith.addf %786, %790 : vector<2x64xf32>
    %820 = arith.addf %794, %798 : vector<2x64xf32>
    %821 = arith.addf %802, %806 : vector<2x64xf32>
    %822 = arith.addf %810, %814 : vector<2x64xf32>
    %823 = arith.addf %815, %816 : vector<2x64xf32>
    %824 = arith.addf %817, %818 : vector<2x64xf32>
    %825 = arith.addf %819, %820 : vector<2x64xf32>
    %826 = arith.addf %821, %822 : vector<2x64xf32>
    %827 = arith.addf %823, %824 : vector<2x64xf32>
    %828 = arith.addf %825, %826 : vector<2x64xf32>
    %829 = arith.addf %827, %828 : vector<2x64xf32>
    %830 = vector.extract_strided_slice %8 {offsets = [14, 0], sizes = [2, 64], strides = [1, 1]} : vector<16x64xf32> to vector<2x64xf32>
    %831 = arith.addf %830, %829 : vector<2x64xf32>
    %832 = math.tanh %831 : vector<2x64xf32>
    %833 = vector.extract_strided_slice %832 {offsets = [0, 0], sizes = [2, 16], strides = [1, 1]} : vector<2x64xf32> to vector<2x16xf32>
    %cst_50 = arith.constant 5.000000e-01 : f32
    %834 = vector.broadcast %cst_50 : f32 to vector<2x16xf32>
    %835 = arith.mulf %834, %833 : vector<2x16xf32>
    %cst_51 = arith.constant 5.000000e-01 : f32
    %836 = vector.broadcast %cst_51 : f32 to vector<2x16xf32>
    %837 = arith.addf %835, %836 : vector<2x16xf32>
    %838 = vector.extract_strided_slice %832 {offsets = [0, 16], sizes = [2, 16], strides = [1, 1]} : vector<2x64xf32> to vector<2x16xf32>
    %cst_52 = arith.constant 5.000000e-01 : f32
    %839 = vector.broadcast %cst_52 : f32 to vector<2x16xf32>
    %840 = arith.mulf %839, %838 : vector<2x16xf32>
    %cst_53 = arith.constant 5.000000e-01 : f32
    %841 = vector.broadcast %cst_53 : f32 to vector<2x16xf32>
    %842 = arith.addf %840, %841 : vector<2x16xf32>
    %843 = vector.extract_strided_slice %832 {offsets = [0, 32], sizes = [2, 16], strides = [1, 1]} : vector<2x64xf32> to vector<2x16xf32>
    %844 = vector.extract_strided_slice %832 {offsets = [0, 48], sizes = [2, 16], strides = [1, 1]} : vector<2x64xf32> to vector<2x16xf32>
    %cst_54 = arith.constant 5.000000e-01 : f32
    %845 = vector.broadcast %cst_54 : f32 to vector<2x16xf32>
    %846 = arith.mulf %845, %844 : vector<2x16xf32>
    %cst_55 = arith.constant 5.000000e-01 : f32
    %847 = vector.broadcast %cst_55 : f32 to vector<2x16xf32>
    %848 = arith.addf %846, %847 : vector<2x16xf32>
    %849 = arith.mulf %842, %750 : vector<2x16xf32>
    %850 = arith.mulf %837, %843 : vector<2x16xf32>
    %851 = arith.addf %849, %850 : vector<2x16xf32>
    %852 = math.tanh %851 : vector<2x16xf32>
    %853 = arith.mulf %848, %852 : vector<2x16xf32>
    %c0_i32_56 = arith.constant 0 : i32
    %854 = vector.broadcast %c0_i32_56 : i32 to vector<2x16xi32>
    %855 = arith.cmpi eq, %9, %854 : vector<2x16xi32>
    %856 = arith.select %855, %853, %749 : vector<2x16xi1>, vector<2x16xf32>
    %857 = vector.extract_strided_slice %856 {offsets = [0, 0], sizes = [1, 16], strides = [1, 1]} : vector<2x16xf32> to vector<1x16xf32>
    %858 = vector.extract_strided_slice %856 {offsets = [1, 0], sizes = [1, 16], strides = [1, 1]} : vector<2x16xf32> to vector<1x16xf32>
    %859 = arith.subf %857, %858 : vector<1x16xf32>
    %860 = math.absf %859 : vector<1x16xf32>
    %861 = arith.mulf %857, %858 : vector<1x16xf32>
    %862 = arith.addf %857, %858 : vector<1x16xf32>
    %cst_57 = arith.constant 5.000000e-01 : f32
    %863 = vector.broadcast %cst_57 : f32 to vector<1x16xf32>
    %864 = arith.mulf %862, %863 : vector<1x16xf32>
    %865 = tpu.concatenate %857, %860, %858, %861, %864 in 1 : vector<1x16xf32>, vector<1x16xf32>, vector<1x16xf32>, vector<1x16xf32>, vector<1x16xf32> -> vector<1x80xf32>
    %c32 = arith.constant 32 : index
    %c0_58 = arith.constant 0 : index
    %866 = vector.load %arg2[%c32, %c0_58] : memref<120x128xf32, #tpu.memory_space<vmem>>, vector<80x25xf32>
    %c112 = arith.constant 112 : index
    %c0_59 = arith.constant 0 : index
    %867 = vector.load %arg2[%c112, %c0_59] : memref<120x128xf32, #tpu.memory_space<vmem>>, vector<1x25xf32>
    %c32_60 = arith.constant 32 : index
    %c64 = arith.constant 64 : index
    %868 = vector.load %arg2[%c32_60, %c64] : memref<120x128xf32, #tpu.memory_space<vmem>>, vector<25x2xf32>
    %c112_61 = arith.constant 112 : index
    %c64_62 = arith.constant 64 : index
    %869 = vector.load %arg2[%c112_61, %c64_62] : memref<120x128xf32, #tpu.memory_space<vmem>>, vector<1x2xf32>
    %cst_63 = arith.constant dense<0.000000e+00> : vector<1x25xf32>
    %870 = tpu.matmul %865, %866, %cst_63 {dimension_numbers = #tpu.dot_dimension_numbers<[1], [0], [0], [1], [0, 0, 1, 1], [], []>} : vector<1x80xf32>, vector<80x25xf32>, vector<1x25xf32> -> vector<1x25xf32>
    %871 = arith.addf %870, %867 : vector<1x25xf32>
    %cst_64 = arith.constant dense<0.000000e+00> : vector<1x2xf32>
    %872 = tpu.matmul %871, %868, %cst_64 {dimension_numbers = #tpu.dot_dimension_numbers<[1], [0], [0], [1], [0, 0, 1, 1], [], []>} : vector<1x25xf32>, vector<25x2xf32>, vector<1x2xf32> -> vector<1x2xf32>
    %873 = arith.addf %872, %869 : vector<1x2xf32>
    %c0_65 = arith.constant 0 : index
    %c0_66 = arith.constant 0 : index
    %874 = vector.load %arg3[%c0_65, %c0_66] : memref<1x2xf32, #tpu.memory_space<vmem>>, vector<1x2xf32>
    tpu.vector_store %arg3[%c0_65, %c0_66], %873 {strides = array<i32>} : memref<1x2xf32, #tpu.memory_space<vmem>>, vector<1x2xf32>,
    return
  }
}

</mosaic_0001>

<llo_original>
// kernel: tpu_custom_call.1
$region0: #{tpu_custom_call.1}
  #allocation0 [shape = 'u32[]', space=smem, size = 0x4, offset = 0x4, fixed_abs, tag = 'smem constant byte address 0x4 - core index']
  #allocation1 [shape = 'u32[72,128]{1,0:T(1,128)}', space=vmem, size = 0x9000, scoped, tag = 'internal scratch']
  %s0 = inlined_call_operand.vmem [shape: f32[16,300], index: 0, kind: input, shape index: {}]
  %s1 = inlined_call_operand.vmem [shape: f32[300,64], index: 1, kind: input, shape index: {}]
  %s2 = inlined_call_operand.vmem [shape: f32[120,128], index: 2, kind: input, shape index: {}]
  %s3 = inlined_call_operand.hbm [shape: f32[1,2], index: 3, kind: output, shape index: {}]
  %s4 = sld [smem:[#allocation0]]
  $region22: #{tpu_custom_call.1} parent=0
    _
  %s6 = ssub.s32 1, %s4
  %s7 = scalar_select 0, %s6, %s4
  $region1: #{tpu_custom_call.1} parent=0
    #allocation2 [shape = 'u8[512]{0}', space=vmem, size = 0x400, scoped, tag = 'output window, operand 0, single buffered']
    #allocation3 [shape = 's32[1]{0}', space=sflag, size = 0x4, scoped, tag = 'scoped memory for tpu_custom_call.1']
    %8 = vsyncpa [#allocation3], 0
    // Predicated region
    $region2: #{tpu_custom_call.1} parent=1 // pred_check
      _
    $region3: #{tpu_custom_call.1} parent=1 // pred_check_branch
      %10 = sbr.rel (0) target = $region5
    $region4: #{tpu_custom_call.1} parent=1 // pred_region
      _
    $region5: #{tpu_custom_call.1} parent=1 // pred_fallthru
      _
    // Predicated region
    $region6: #{tpu_custom_call.1} parent=1 // pred_check
      _
    $region7: #{tpu_custom_call.1} parent=1 // pred_check_branch
      %12 = sbr.rel (0) target = $region9
    $region8: #{tpu_custom_call.1} parent=1 // pred_region
      _
    $region9: #{tpu_custom_call.1} parent=1 // pred_fallthru
      _
    // Predicated region
    $region10: #{tpu_custom_call.1} parent=1 // pred_check
      _
    $region11: #{tpu_custom_call.1} parent=1 // pred_check_branch
      %14 = sbr.rel (0) target = $region13
    $region12: #{tpu_custom_call.1} parent=1 // pred_region
      _
    $region13: #{tpu_custom_call.1} parent=1 // pred_fallthru
      _
    %v15 = vld [vmem:[%s2] sm:$0xff]
    %v16 = vld [vmem:[%s2 + $0x8] sm:$0xff]
    %v17 = vld [vmem:[%s2 + $0x10] sm:$0x1]
    %v18 = vld [vmem:[%s2 + $0x18] sm:$0x3]
    %v19 = vld [vmem:[%s2 + $0x1a] sm:$0x3]
    %v20 = vld [vmem:[%s0] sm:$0xff]
    %v21 = vld [vmem:[%s0 + $0x8] sm:$0xff]
    %v22 = vld [vmem:[%s0 + $0x10] sm:$0xff]
    %v23 = vld [vmem:[%s0 + $0x18] sm:$0xff]
    %v24 = vld [vmem:[%s0 + $0x20] sm:$0xff]
    %v25 = vld [vmem:[%s0 + $0x28] sm:$0xff]
    %v26 = vld [vmem:[%s1] sm:$0xff]
    %v27 = vld [vmem:[%s1 + $0x8] sm:$0xff]
    %v28 = vld [vmem:[%s1 + $0x10] sm:$0xff]
    %v29 = vld [vmem:[%s1 + $0x18] sm:$0xff]
    %v30 = vld [vmem:[%s1 + $0x20] sm:$0xff]
    %v31 = vld [vmem:[%s1 + $0x28] sm:$0xff]
    %v32 = vld [vmem:[%s1 + $0x30] sm:$0xff]
    %v33 = vld [vmem:[%s1 + $0x38] sm:$0xff]
    %v34 = vld [vmem:[%s1 + $0x40] sm:$0xff]
    %v35 = vld [vmem:[%s1 + $0x48] sm:$0xff]
    %v36 = vld [vmem:[%s1 + $0x50] sm:$0xff]
    %v37 = vld [vmem:[%s1 + $0x58] sm:$0xff]
    %v38 = vld [vmem:[%s1 + $0x60] sm:$0xff]
    %v39 = vld [vmem:[%s1 + $0x68] sm:$0xff]
    %v40 = vld [vmem:[%s1 + $0x70] sm:$0xff]
    %v41 = vld [vmem:[%s1 + $0x78] sm:$0xff]
    %v42 = vld [vmem:[%s1 + $0x80] sm:$0xff]
    %v43 = vld [vmem:[%s1 + $0x88] sm:$0xff]
    %v44 = vld [vmem:[%s1 + $0x90] sm:$0xff]
    %v45 = vld [vmem:[%s1 + $0x98] sm:$0xff]
    %v46 = vld [vmem:[%s1 + $0xa0] sm:$0xff]
    %v47 = vld [vmem:[%s1 + $0xa8] sm:$0xff]
    %v48 = vld [vmem:[%s1 + $0xb0] sm:$0xff]
    %v49 = vld [vmem:[%s1 + $0xb8] sm:$0xff]
    %v50 = vld [vmem:[%s1 + $0xc0] sm:$0xff]
    %v51 = vld [vmem:[%s1 + $0xc8] sm:$0xff]
    %v52 = vld [vmem:[%s1 + $0xd0] sm:$0xff]
    %v53 = vld [vmem:[%s1 + $0xd8] sm:$0xff]
    %v54 = vld [vmem:[%s1 + $0xe0] sm:$0xff]
    %v55 = vld [vmem:[%s1 + $0xe8] sm:$0xff]
    %v56 = vld [vmem:[%s1 + $0xf0] sm:$0xff]
    %v57 = vld [vmem:[%s1 + $0xf8] sm:$0xff]
    %v58 = vld [vmem:[%s1 + $0x100] sm:$0xff]
    %v59 = vld [vmem:[%s1 + $0x108] sm:$0xff]
    %v60 = vld [vmem:[%s1 + $0x110] sm:$0xff]
    %v61 = vld [vmem:[%s1 + $0x118] sm:$0xff]
    %v62 = vld [vmem:[%s1 + $0x120] sm:$0xff]
    %v63 = vld [vmem:[%s1 + $0x128] sm:$0xf]
    %v64 = vperm.slane %v17, 0
    %vm65 = vcmask 359424
    %v67 = vsel %vm65, %v22, 0
    %v70 = vsel %vm65, %v25, 0
    %vm72 = vcmask 1043456
    %v74 = vsel %vm72, %v63, 0
    %76 = vmatpush.msra.mxu0 %v41
    %77 = vmatpush.msra.mxu0 %v40
    %78 = vmatpush.msra.mxu0 %v39
    %79 = vmatpush.msra.mxu0 %v38
    %80 = vmatpush.msra.mxu0 %v37
    %81 = vmatpush.msra.mxu0 %v36
    %82 = vmatpush.msra.mxu0 %v35
    %83 = vmatpush.msra.mxu0 %v34
    %84 = vmatpush.msra.mxu0 %v33
    %85 = vmatpush.msra.mxu0 %v32
    %86 = vmatpush.msra.mxu0 %v31
    %87 = vmatpush.msra.mxu0 %v30
    %88 = vmatpush.msra.mxu0 %v29
    %89 = vmatpush.msra.mxu0 %v28
    %90 = vmatpush.msra.mxu0 %v27
    %91 = vmatpush.msra.mxu0 %v26
    %92 = vmatmul.f32.gmra.mxu0 %v20
    %v93 = vpop.f32.mrf.mxu0
    %v94 = vadd.f32 %v64, %v93
    %95 = vmatmul.f32.gmra.mxu0 %v23
    %v96 = vpop.f32.mrf.mxu0
    %v97 = vadd.f32 %v64, %v96
    %98 = vdwg.mxu0
    %99 = vmatpush.msra.mxu0 %v57
    %100 = vmatpush.msra.mxu0 %v56
    %101 = vmatpush.msra.mxu0 %v55
    %102 = vmatpush.msra.mxu0 %v54
    %103 = vmatpush.msra.mxu0 %v53
    %104 = vmatpush.msra.mxu0 %v52
    %105 = vmatpush.msra.mxu0 %v51
    %106 = vmatpush.msra.mxu0 %v50
    %107 = vmatpush.msra.mxu0 %v49
    %108 = vmatpush.msra.mxu0 %v48
    %109 = vmatpush.msra.mxu0 %v47
    %110 = vmatpush.msra.mxu0 %v46
    %111 = vmatpush.msra.mxu0 %v45
    %112 = vmatpush.msra.mxu0 %v44
    %113 = vmatpush.msra.mxu0 %v43
    %114 = vmatpush.msra.mxu0 %v42
    %115 = vmatmul.f32.gmra.mxu0 %v21
    %v116 = vpop.f32.mrf.mxu0
    %v117 = vadd.f32 %v94, %v116
    %118 = vmatmul.f32.gmra.mxu0 %v24
    %v119 = vpop.f32.mrf.mxu0
    %v120 = vadd.f32 %v97, %v119
    %121 = vdwg.mxu0
    %122 = vmatpush.msra.mxu0 0.0
    %123 = vmatpush.msra.mxu0 0.0
    %124 = vmatpush.msra.mxu0 0.0
    %125 = vmatpush.msra.mxu0 0.0
    %126 = vmatpush.msra.mxu0 0.0
    %127 = vmatpush.msra.mxu0 0.0
    %128 = vmatpush.msra.mxu0 0.0
    %129 = vmatpush.msra.mxu0 0.0
    %130 = vmatpush.msra.mxu0 0.0
    %131 = vmatpush.msra.mxu0 0.0
    %132 = vmatpush.msra.mxu0 %v74
    %133 = vmatpush.msra.mxu0 %v62
    %134 = vmatpush.msra.mxu0 %v61
    %135 = vmatpush.msra.mxu0 %v60
    %136 = vmatpush.msra.mxu0 %v59
    %137 = vmatpush.msra.mxu0 %v58
    %138 = vmatmul.f32.gmra.mxu0 %v67
    %v139 = vpop.f32.mrf.mxu0
    %v140 = vadd.f32 %v117, %v139
    %141 = vmatmul.f32.gmra.mxu0 %v70
    %v142 = vpop.f32.mrf.mxu0
    %v143 = vadd.f32 %v120, %v142
    %144 = vdwg.mxu0
    %v145 = vlaneseq
    %v146 = vshrl.u32 %v145, 7
    %148 = vset.pattern.permute.xlu0 0
    %149 = vperm.xlu0 %148, %v18
    %v150 = vpop.permute.xlu0 %149
    %v152 = vperm.slane %v15, 0
    %v153 = vmul.f32 %v150, %v152
    %154 = vset.pattern.permute.xlu0 1
    %155 = vperm.xlu0 %154, %v18
    %v156 = vpop.permute.xlu0 %155
    %v158 = vperm.slane %v15, 1
    %v159 = vmul.f32 %v156, %v158
    %160 = vset.pattern.permute.xlu0 2
    %161 = vperm.xlu0 %160, %v18
    %v162 = vpop.permute.xlu0 %161
    %v164 = vperm.slane %v15, 2
    %v165 = vmul.f32 %v162, %v164
    %166 = vset.pattern.permute.xlu0 3
    %167 = vperm.xlu0 %166, %v18
    %v168 = vpop.permute.xlu0 %167
    %v170 = vperm.slane %v15, 3
    %v171 = vmul.f32 %v168, %v170
    %172 = vset.pattern.permute.xlu0 4
    %173 = vperm.xlu0 %172, %v18
    %v174 = vpop.permute.xlu0 %173
    %v176 = vperm.slane %v15, 4
    %v177 = vmul.f32 %v174, %v176
    %178 = vset.pattern.permute.xlu0 5
    %179 = vperm.xlu0 %178, %v18
    %v180 = vpop.permute.xlu0 %179
    %v182 = vperm.slane %v15, 5
    %v183 = vmul.f32 %v180, %v182
    %184 = vset.pattern.permute.xlu0 6
    %185 = vperm.xlu0 %184, %v18
    %v186 = vpop.permute.xlu0 %185
    %v188 = vperm.slane %v15, 6
    %v189 = vmul.f32 %v186, %v188
    %190 = vset.pattern.permute.xlu0 7
    %191 = vperm.xlu0 %190, %v18
    %v192 = vpop.permute.xlu0 %191
    %v194 = vperm.slane %v15, 7
    %v195 = vmul.f32 %v192, %v194
    %196 = vset.pattern.permute.xlu0 8
    %197 = vperm.xlu0 %196, %v18
    %v198 = vpop.permute.xlu0 %197
    %v200 = vperm.slane %v16, 0
    %v201 = vmul.f32 %v198, %v200
    %202 = vset.pattern.permute.xlu0 9
    %203 = vperm.xlu0 %202, %v18
    %v204 = vpop.permute.xlu0 %203
    %v206 = vperm.slane %v16, 1
    %v207 = vmul.f32 %v204, %v206
    %208 = vset.pattern.permute.xlu0 10
    %209 = vperm.xlu0 %208, %v18
    %v210 = vpop.permute.xlu0 %209
    %v212 = vperm.slane %v16, 2
    %v213 = vmul.f32 %v210, %v212
    %214 = vset.pattern.permute.xlu0 11
    %215 = vperm.xlu0 %214, %v18
    %v216 = vpop.permute.xlu0 %215
    %v218 = vperm.slane %v16, 3
    %v219 = vmul.f32 %v216, %v218
    %220 = vset.pattern.permute.xlu0 12
    %221 = vperm.xlu0 %220, %v18
    %v222 = vpop.permute.xlu0 %221
    %v224 = vperm.slane %v16, 4
    %v225 = vmul.f32 %v222, %v224
    %226 = vset.pattern.permute.xlu0 13
    %227 = vperm.xlu0 %226, %v18
    %v228 = vpop.permute.xlu0 %227
    %v230 = vperm.slane %v16, 5
    %v231 = vmul.f32 %v228, %v230
    %232 = vset.pattern.permute.xlu0 14
    %233 = vperm.xlu0 %232, %v18
    %v234 = vpop.permute.xlu0 %233
    %v236 = vperm.slane %v16, 6
    %v237 = vmul.f32 %v234, %v236
    %238 = vset.pattern.permute.xlu0 15
    %239 = vperm.xlu0 %238, %v18
    %v240 = vpop.permute.xlu0 %239
    %v242 = vperm.slane %v16, 7
    %v243 = vmul.f32 %v240, %v242
    %v244 = vadd.f32 %v153, %v159
    %v245 = vadd.f32 %v165, %v171
    %v246 = vadd.f32 %v177, %v183
    %v247 = vadd.f32 %v189, %v195
    %v248 = vadd.f32 %v201, %v207
    %v249 = vadd.f32 %v213, %v219
    %v250 = vadd.f32 %v225, %v231
    %v251 = vadd.f32 %v237, %v243
    %v252 = vadd.f32 %v244, %v245
    %v253 = vadd.f32 %v246, %v247
    %v254 = vadd.f32 %v248, %v249
    %v255 = vadd.f32 %v250, %v251
    %v256 = vadd.f32 %v252, %v253
    %v257 = vadd.f32 %v254, %v255
    %v258 = vadd.f32 %v256, %v257
    %v259 = vadd.f32 %v140, %v258
    %v260 = vtanh.pop %v259
    %v261 = vmul.f32 %v260, 0.5
    %v262 = vadd.f32 %v261, 0.5
    %264 = vrot.lane.b32.xlu0 %v19, 16
    %v265 = vpop.permute.xlu0 %264
    %v267 = vmul.f32 %v262, %v265
    %269 = vrot.lane.b32.xlu0 %v260, 96
    %v270 = vpop.permute.xlu0 %269
    %v272 = vmul.f32 %v262, %v270
    %274 = vrot.lane.b32.xlu0 %v272, 16
    %v275 = vpop.permute.xlu0 %274
    %v277 = vadd.f32 %v267, %v275
    %v278 = vtanh.pop %v277
    %280 = vrot.lane.b32.xlu0 %v278, 32
    %v281 = vpop.permute.xlu0 %280
    %v283 = vmul.f32 %v262, %v281
    %285 = vset.pattern.permute.xlu0 48
    %286 = vperm.xlu0 %285, %v283
    %v287 = vpop.permute.xlu0 %286
    %v289 = vmul.f32 %v287, %v152
    %290 = vset.pattern.permute.xlu0 49
    %291 = vperm.xlu0 %290, %v283
    %v292 = vpop.permute.xlu0 %291
    %v294 = vmul.f32 %v292, %v158
    %295 = vset.pattern.permute.xlu0 50
    %296 = vperm.xlu0 %295, %v283
    %v297 = vpop.permute.xlu0 %296
    %v299 = vmul.f32 %v297, %v164
    %300 = vset.pattern.permute.xlu0 51
    %301 = vperm.xlu0 %300, %v283
    %v302 = vpop.permute.xlu0 %301
    %v304 = vmul.f32 %v302, %v170
    %305 = vset.pattern.permute.xlu0 52
    %306 = vperm.xlu0 %305, %v283
    %v307 = vpop.permute.xlu0 %306
    %v309 = vmul.f32 %v307, %v176
    %310 = vset.pattern.permute.xlu0 53
    %311 = vperm.xlu0 %310, %v283
    %v312 = vpop.permute.xlu0 %311
    %v314 = vmul.f32 %v312, %v182
    %315 = vset.pattern.permute.xlu0 54
    %316 = vperm.xlu0 %315, %v283
    %v317 = vpop.permute.xlu0 %316
    %v319 = vmul.f32 %v317, %v188
    %320 = vset.pattern.permute.xlu0 55
    %321 = vperm.xlu0 %320, %v283
    %v322 = vpop.permute.xlu0 %321
    %v324 = vmul.f32 %v322, %v194
    %325 = vset.pattern.permute.xlu0 56
    %326 = vperm.xlu0 %325, %v283
    %v327 = vpop.permute.xlu0 %326
    %v329 = vmul.f32 %v327, %v200
    %330 = vset.pattern.permute.xlu0 57
    %331 = vperm.xlu0 %330, %v283
    %v332 = vpop.permute.xlu0 %331
    %v334 = vmul.f32 %v332, %v206
    %335 = vset.pattern.permute.xlu0 58
    %336 = vperm.xlu0 %335, %v283
    %v337 = vpop.permute.xlu0 %336
    %v339 = vmul.f32 %v337, %v212
    %340 = vset.pattern.permute.xlu0 59
    %341 = vperm.xlu0 %340, %v283
    %v342 = vpop.permute.xlu0 %341
    %v344 = vmul.f32 %v342, %v218
    %345 = vset.pattern.permute.xlu0 60
    %346 = vperm.xlu0 %345, %v283
    %v347 = vpop.permute.xlu0 %346
    %v349 = vmul.f32 %v347, %v224
    %350 = vset.pattern.permute.xlu0 61
    %351 = vperm.xlu0 %350, %v283
    %v352 = vpop.permute.xlu0 %351
    %v354 = vmul.f32 %v352, %v230
    %355 = vset.pattern.permute.xlu0 62
    %356 = vperm.xlu0 %355, %v283
    %v357 = vpop.permute.xlu0 %356
    %v359 = vmul.f32 %v357, %v236
    %360 = vset.pattern.permute.xlu0 63
    %361 = vperm.xlu0 %360, %v283
    %v362 = vpop.permute.xlu0 %361
    %v364 = vmul.f32 %v362, %v242
    %v365 = vadd.f32 %v289, %v294
    %v366 = vadd.f32 %v299, %v304
    %v367 = vadd.f32 %v309, %v314
    %v368 = vadd.f32 %v319, %v324
    %v369 = vadd.f32 %v329, %v334
    %v370 = vadd.f32 %v339, %v344
    %v371 = vadd.f32 %v349, %v354
    %v372 = vadd.f32 %v359, %v364
    %v373 = vadd.f32 %v365, %v366
    %v374 = vadd.f32 %v367, %v368
    %v375 = vadd.f32 %v369, %v370
    %v376 = vadd.f32 %v371, %v372
    %v377 = vadd.f32 %v373, %v374
    %v378 = vadd.f32 %v375, %v376
    %v379 = vadd.f32 %v377, %v378
    %v381 = vrot.slane %v379, 6
    %v383 = vadd.f32 %v140, %v381
    %v384 = vtanh.pop %v383
    %v385 = vmul.f32 %v384, 0.5
    %v386 = vadd.f32 %v385, 0.5
    %v388 = vrot.slane %v277, 6
    %v390 = vmul.f32 %v386, %v388
    %392 = vrot.lane.b32.xlu0 %v384, 96
    %v393 = vpop.permute.xlu0 %392
    %v395 = vmul.f32 %v386, %v393
    %397 = vrot.lane.b32.xlu0 %v395, 16
    %v398 = vpop.permute.xlu0 %397
    %v400 = vadd.f32 %v390, %v398
    %v401 = vtanh.pop %v400
    %403 = vrot.lane.b32.xlu0 %v401, 32
    %v404 = vpop.permute.xlu0 %403
    %v406 = vmul.f32 %v386, %v404
    %408 = vset.pattern.permute.xlu0 48
    %409 = vperm.xlu0 %408, %v406
    %v410 = vpop.permute.xlu0 %409
    %v412 = vmul.f32 %v410, %v152
    %413 = vset.pattern.permute.xlu0 49
    %414 = vperm.xlu0 %413, %v406
    %v415 = vpop.permute.xlu0 %414
    %v417 = vmul.f32 %v415, %v158
    %418 = vset.pattern.permute.xlu0 50
    %419 = vperm.xlu0 %418, %v406
    %v420 = vpop.permute.xlu0 %419
    %v422 = vmul.f32 %v420, %v164
    %423 = vset.pattern.permute.xlu0 51
    %424 = vperm.xlu0 %423, %v406
    %v425 = vpop.permute.xlu0 %424
    %v427 = vmul.f32 %v425, %v170
    %428 = vset.pattern.permute.xlu0 52
    %429 = vperm.xlu0 %428, %v406
    %v430 = vpop.permute.xlu0 %429
    %v432 = vmul.f32 %v430, %v176
    %433 = vset.pattern.permute.xlu0 53
    %434 = vperm.xlu0 %433, %v406
    %v435 = vpop.permute.xlu0 %434
    %v437 = vmul.f32 %v435, %v182
    %438 = vset.pattern.permute.xlu0 54
    %439 = vperm.xlu0 %438, %v406
    %v440 = vpop.permute.xlu0 %439
    %v442 = vmul.f32 %v440, %v188
    %443 = vset.pattern.permute.xlu0 55
    %444 = vperm.xlu0 %443, %v406
    %v445 = vpop.permute.xlu0 %444
    %v447 = vmul.f32 %v445, %v194
    %448 = vset.pattern.permute.xlu0 56
    %449 = vperm.xlu0 %448, %v406
    %v450 = vpop.permute.xlu0 %449
    %v452 = vmul.f32 %v450, %v200
    %453 = vset.pattern.permute.xlu0 57
    %454 = vperm.xlu0 %453, %v406
    %v455 = vpop.permute.xlu0 %454
    %v457 = vmul.f32 %v455, %v206
    %458 = vset.pattern.permute.xlu0 58
    %459 = vperm.xlu0 %458, %v406
    %v460 = vpop.permute.xlu0 %459
    %v462 = vmul.f32 %v460, %v212
    %463 = vset.pattern.permute.xlu0 59
    %464 = vperm.xlu0 %463, %v406
    %v465 = vpop.permute.xlu0 %464
    %v467 = vmul.f32 %v465, %v218
    %468 = vset.pattern.permute.xlu0 60
    %469 = vperm.xlu0 %468, %v406
    %v470 = vpop.permute.xlu0 %469
    %v472 = vmul.f32 %v470, %v224
    %473 = vset.pattern.permute.xlu0 61
    %474 = vperm.xlu0 %473, %v406
    %v475 = vpop.permute.xlu0 %474
    %v477 = vmul.f32 %v475, %v230
    %478 = vset.pattern.permute.xlu0 62
    %479 = vperm.xlu0 %478, %v406
    %v480 = vpop.permute.xlu0 %479
    %v482 = vmul.f32 %v480, %v236
    %483 = vset.pattern.permute.xlu0 63
    %484 = vperm.xlu0 %483, %v406
    %v485 = vpop.permute.xlu0 %484
    %v487 = vmul.f32 %v485, %v242
    %v488 = vadd.f32 %v412, %v417
    %v489 = vadd.f32 %v422, %v427
    %v490 = vadd.f32 %v432, %v437
    %v491 = vadd.f32 %v442, %v447
    %v492 = vadd.f32 %v452, %v457
    %v493 = vadd.f32 %v462, %v467
    %v494 = vadd.f32 %v472, %v477
    %v495 = vadd.f32 %v482, %v487
    %v496 = vadd.f32 %v488, %v489
    %v497 = vadd.f32 %v490, %v491
    %v498 = vadd.f32 %v492, %v493
    %v499 = vadd.f32 %v494, %v495
    %v500 = vadd.f32 %v496, %v497
    %v501 = vadd.f32 %v498, %v499
    %v502 = vadd.f32 %v500, %v501
    %v504 = vrot.slane %v502, 6
    %v506 = vadd.f32 %v140, %v504
    %v507 = vtanh.pop %v506
    %v508 = vmul.f32 %v507, 0.5
    %v509 = vadd.f32 %v508, 0.5
    %v511 = vrot.slane %v400, 6
    %v513 = vmul.f32 %v509, %v511
    %515 = vrot.lane.b32.xlu0 %v507, 96
    %v516 = vpop.permute.xlu0 %515
    %v518 = vmul.f32 %v509, %v516
    %520 = vrot.lane.b32.xlu0 %v518, 16
    %v521 = vpop.permute.xlu0 %520
    %v523 = vadd.f32 %v513, %v521
    %v524 = vtanh.pop %v523
    %526 = vrot.lane.b32.xlu0 %v524, 32
    %v527 = vpop.permute.xlu0 %526
    %v529 = vmul.f32 %v509, %v527
    %531 = vset.pattern.permute.xlu0 48
    %532 = vperm.xlu0 %531, %v529
    %v533 = vpop.permute.xlu0 %532
    %v535 = vmul.f32 %v533, %v152
    %536 = vset.pattern.permute.xlu0 49
    %537 = vperm.xlu0 %536, %v529
    %v538 = vpop.permute.xlu0 %537
    %v540 = vmul.f32 %v538, %v158
    %541 = vset.pattern.permute.xlu0 50
    %542 = vperm.xlu0 %541, %v529
    %v543 = vpop.permute.xlu0 %542
    %v545 = vmul.f32 %v543, %v164
    %546 = vset.pattern.permute.xlu0 51
    %547 = vperm.xlu0 %546, %v529
    %v548 = vpop.permute.xlu0 %547
    %v550 = vmul.f32 %v548, %v170
    %551 = vset.pattern.permute.xlu0 52
    %552 = vperm.xlu0 %551, %v529
    %v553 = vpop.permute.xlu0 %552
    %v555 = vmul.f32 %v553, %v176
    %556 = vset.pattern.permute.xlu0 53
    %557 = vperm.xlu0 %556, %v529
    %v558 = vpop.permute.xlu0 %557
    %v560 = vmul.f32 %v558, %v182
    %561 = vset.pattern.permute.xlu0 54
    %562 = vperm.xlu0 %561, %v529
    %v563 = vpop.permute.xlu0 %562
    %v565 = vmul.f32 %v563, %v188
    %566 = vset.pattern.permute.xlu0 55
    %567 = vperm.xlu0 %566, %v529
    %v568 = vpop.permute.xlu0 %567
    %v570 = vmul.f32 %v568, %v194
    %571 = vset.pattern.permute.xlu0 56
    %572 = vperm.xlu0 %571, %v529
    %v573 = vpop.permute.xlu0 %572
    %v575 = vmul.f32 %v573, %v200
    %576 = vset.pattern.permute.xlu0 57
    %577 = vperm.xlu0 %576, %v529
    %v578 = vpop.permute.xlu0 %577
    %v580 = vmul.f32 %v578, %v206
    %581 = vset.pattern.permute.xlu0 58
    %582 = vperm.xlu0 %581, %v529
    %v583 = vpop.permute.xlu0 %582
    %v585 = vmul.f32 %v583, %v212
    %586 = vset.pattern.permute.xlu0 59
    %587 = vperm.xlu0 %586, %v529
    %v588 = vpop.permute.xlu0 %587
    %v590 = vmul.f32 %v588, %v218
    %591 = vset.pattern.permute.xlu0 60
    %592 = vperm.xlu0 %591, %v529
    %v593 = vpop.permute.xlu0 %592
    %v595 = vmul.f32 %v593, %v224
    %596 = vset.pattern.permute.xlu0 61
    %597 = vperm.xlu0 %596, %v529
    %v598 = vpop.permute.xlu0 %597
    %v600 = vmul.f32 %v598, %v230
    %601 = vset.pattern.permute.xlu0 62
    %602 = vperm.xlu0 %601, %v529
    %v603 = vpop.permute.xlu0 %602
    %v605 = vmul.f32 %v603, %v236
    %606 = vset.pattern.permute.xlu0 63
    %607 = vperm.xlu0 %606, %v529
    %v608 = vpop.permute.xlu0 %607
    %v610 = vmul.f32 %v608, %v242
    %v611 = vadd.f32 %v535, %v540
    %v612 = vadd.f32 %v545, %v550
    %v613 = vadd.f32 %v555, %v560
    %v614 = vadd.f32 %v565, %v570
    %v615 = vadd.f32 %v575, %v580
    %v616 = vadd.f32 %v585, %v590
    %v617 = vadd.f32 %v595, %v600
    %v618 = vadd.f32 %v605, %v610
    %v619 = vadd.f32 %v611, %v612
    %v620 = vadd.f32 %v613, %v614
    %v621 = vadd.f32 %v615, %v616
    %v622 = vadd.f32 %v617, %v618
    %v623 = vadd.f32 %v619, %v620
    %v624 = vadd.f32 %v621, %v622
    %v625 = vadd.f32 %v623, %v624
    %v627 = vrot.slane %v625, 6
    %v629 = vadd.f32 %v140, %v627
    %v630 = vtanh.pop %v629
    %v631 = vmul.f32 %v630, 0.5
    %v632 = vadd.f32 %v631, 0.5
    %v634 = vrot.slane %v523, 6
    %v636 = vmul.f32 %v632, %v634
    %638 = vrot.lane.b32.xlu0 %v630, 96
    %v639 = vpop.permute.xlu0 %638
    %v641 = vmul.f32 %v632, %v639
    %643 = vrot.lane.b32.xlu0 %v641, 16
    %v644 = vpop.permute.xlu0 %643
    %v646 = vadd.f32 %v636, %v644
    %v647 = vtanh.pop %v646
    %649 = vrot.lane.b32.xlu0 %v647, 32
    %v650 = vpop.permute.xlu0 %649
    %v652 = vmul.f32 %v632, %v650
    %654 = vset.pattern.permute.xlu0 48
    %655 = vperm.xlu0 %654, %v652
    %v656 = vpop.permute.xlu0 %655
    %v658 = vmul.f32 %v656, %v152
    %659 = vset.pattern.permute.xlu0 49
    %660 = vperm.xlu0 %659, %v652
    %v661 = vpop.permute.xlu0 %660
    %v663 = vmul.f32 %v661, %v158
    %664 = vset.pattern.permute.xlu0 50
    %665 = vperm.xlu0 %664, %v652
    %v666 = vpop.permute.xlu0 %665
    %v668 = vmul.f32 %v666, %v164
    %669 = vset.pattern.permute.xlu0 51
    %670 = vperm.xlu0 %669, %v652
    %v671 = vpop.permute.xlu0 %670
    %v673 = vmul.f32 %v671, %v170
    %674 = vset.pattern.permute.xlu0 52
    %675 = vperm.xlu0 %674, %v652
    %v676 = vpop.permute.xlu0 %675
    %v678 = vmul.f32 %v676, %v176
    %679 = vset.pattern.permute.xlu0 53
    %680 = vperm.xlu0 %679, %v652
    %v681 = vpop.permute.xlu0 %680
    %v683 = vmul.f32 %v681, %v182
    %684 = vset.pattern.permute.xlu0 54
    %685 = vperm.xlu0 %684, %v652
    %v686 = vpop.permute.xlu0 %685
    %v688 = vmul.f32 %v686, %v188
    %689 = vset.pattern.permute.xlu0 55
    %690 = vperm.xlu0 %689, %v652
    %v691 = vpop.permute.xlu0 %690
    %v693 = vmul.f32 %v691, %v194
    %694 = vset.pattern.permute.xlu0 56
    %695 = vperm.xlu0 %694, %v652
    %v696 = vpop.permute.xlu0 %695
    %v698 = vmul.f32 %v696, %v200
    %699 = vset.pattern.permute.xlu0 57
    %700 = vperm.xlu0 %699, %v652
    %v701 = vpop.permute.xlu0 %700
    %v703 = vmul.f32 %v701, %v206
    %704 = vset.pattern.permute.xlu0 58
    %705 = vperm.xlu0 %704, %v652
    %v706 = vpop.permute.xlu0 %705
    %v708 = vmul.f32 %v706, %v212
    %709 = vset.pattern.permute.xlu0 59
    %710 = vperm.xlu0 %709, %v652
    %v711 = vpop.permute.xlu0 %710
    %v713 = vmul.f32 %v711, %v218
    %714 = vset.pattern.permute.xlu0 60
    %715 = vperm.xlu0 %714, %v652
    %v716 = vpop.permute.xlu0 %715
    %v718 = vmul.f32 %v716, %v224
    %719 = vset.pattern.permute.xlu0 61
    %720 = vperm.xlu0 %719, %v652
    %v721 = vpop.permute.xlu0 %720
    %v723 = vmul.f32 %v721, %v230
    %724 = vset.pattern.permute.xlu0 62
    %725 = vperm.xlu0 %724, %v652
    %v726 = vpop.permute.xlu0 %725
    %v728 = vmul.f32 %v726, %v236
    %729 = vset.pattern.permute.xlu0 63
    %730 = vperm.xlu0 %729, %v652
    %v731 = vpop.permute.xlu0 %730
    %v733 = vmul.f32 %v731, %v242
    %v734 = vadd.f32 %v658, %v663
    %v735 = vadd.f32 %v668, %v673
    %v736 = vadd.f32 %v678, %v683
    %v737 = vadd.f32 %v688, %v693
    %v738 = vadd.f32 %v698, %v703
    %v739 = vadd.f32 %v708, %v713
    %v740 = vadd.f32 %v718, %v723
    %v741 = vadd.f32 %v728, %v733
    %v742 = vadd.f32 %v734, %v735
    %v743 = vadd.f32 %v736, %v737
    %v744 = vadd.f32 %v738, %v739
    %v745 = vadd.f32 %v740, %v741
    %v746 = vadd.f32 %v742, %v743
    %v747 = vadd.f32 %v744, %v745
    %v748 = vadd.f32 %v746, %v747
    %v750 = vrot.slane %v748, 6
    %v752 = vadd.f32 %v143, %v750
    %v753 = vtanh.pop %v752
    %v754 = vmul.f32 %v753, 0.5
    %v755 = vadd.f32 %v754, 0.5
    %v757 = vrot.slane %v646, 6
    %v759 = vmul.f32 %v755, %v757
    %761 = vrot.lane.b32.xlu0 %v753, 96
    %v762 = vpop.permute.xlu0 %761
    %v764 = vmul.f32 %v755, %v762
    %766 = vrot.lane.b32.xlu0 %v764, 16
    %v767 = vpop.permute.xlu0 %766
    %v769 = vadd.f32 %v759, %v767
    %v770 = vtanh.pop %v769
    %772 = vrot.lane.b32.xlu0 %v770, 32
    %v773 = vpop.permute.xlu0 %772
    %v775 = vmul.f32 %v755, %v773
    %777 = vset.pattern.permute.xlu0 48
    %778 = vperm.xlu0 %777, %v775
    %v779 = vpop.permute.xlu0 %778
    %v781 = vmul.f32 %v779, %v152
    %782 = vset.pattern.permute.xlu0 49
    %783 = vperm.xlu0 %782, %v775
    %v784 = vpop.permute.xlu0 %783
    %v786 = vmul.f32 %v784, %v158
    %787 = vset.pattern.permute.xlu0 50
    %788 = vperm.xlu0 %787, %v775
    %v789 = vpop.permute.xlu0 %788
    %v791 = vmul.f32 %v789, %v164
    %792 = vset.pattern.permute.xlu0 51
    %793 = vperm.xlu0 %792, %v775
    %v794 = vpop.permute.xlu0 %793
    %v796 = vmul.f32 %v794, %v170
    %797 = vset.pattern.permute.xlu0 52
    %798 = vperm.xlu0 %797, %v775
    %v799 = vpop.permute.xlu0 %798
    %v801 = vmul.f32 %v799, %v176
    %802 = vset.pattern.permute.xlu0 53
    %803 = vperm.xlu0 %802, %v775
    %v804 = vpop.permute.xlu0 %803
    %v806 = vmul.f32 %v804, %v182
    %807 = vset.pattern.permute.xlu0 54
    %808 = vperm.xlu0 %807, %v775
    %v809 = vpop.permute.xlu0 %808
    %v811 = vmul.f32 %v809, %v188
    %812 = vset.pattern.permute.xlu0 55
    %813 = vperm.xlu0 %812, %v775
    %v814 = vpop.permute.xlu0 %813
    %v816 = vmul.f32 %v814, %v194
    %817 = vset.pattern.permute.xlu0 56
    %818 = vperm.xlu0 %817, %v775
    %v819 = vpop.permute.xlu0 %818
    %v821 = vmul.f32 %v819, %v200
    %822 = vset.pattern.permute.xlu0 57
    %823 = vperm.xlu0 %822, %v775
    %v824 = vpop.permute.xlu0 %823
    %v826 = vmul.f32 %v824, %v206
    %827 = vset.pattern.permute.xlu0 58
    %828 = vperm.xlu0 %827, %v775
    %v829 = vpop.permute.xlu0 %828
    %v831 = vmul.f32 %v829, %v212
    %832 = vset.pattern.permute.xlu0 59
    %833 = vperm.xlu0 %832, %v775
    %v834 = vpop.permute.xlu0 %833
    %v836 = vmul.f32 %v834, %v218
    %837 = vset.pattern.permute.xlu0 60
    %838 = vperm.xlu0 %837, %v775
    %v839 = vpop.permute.xlu0 %838
    %v841 = vmul.f32 %v839, %v224
    %842 = vset.pattern.permute.xlu0 61
    %843 = vperm.xlu0 %842, %v775
    %v844 = vpop.permute.xlu0 %843
    %v846 = vmul.f32 %v844, %v230
    %847 = vset.pattern.permute.xlu0 62
    %848 = vperm.xlu0 %847, %v775
    %v849 = vpop.permute.xlu0 %848
    %v851 = vmul.f32 %v849, %v236
    %852 = vset.pattern.permute.xlu0 63
    %853 = vperm.xlu0 %852, %v775
    %v854 = vpop.permute.xlu0 %853
    %v856 = vmul.f32 %v854, %v242
    %v857 = vadd.f32 %v781, %v786
    %v858 = vadd.f32 %v791, %v796
    %v859 = vadd.f32 %v801, %v806
    %v860 = vadd.f32 %v811, %v816
    %v861 = vadd.f32 %v821, %v826
    %v862 = vadd.f32 %v831, %v836
    %v863 = vadd.f32 %v841, %v846
    %v864 = vadd.f32 %v851, %v856
    %v865 = vadd.f32 %v857, %v858
    %v866 = vadd.f32 %v859, %v860
    %v867 = vadd.f32 %v861, %v862
    %v868 = vadd.f32 %v863, %v864
    %v869 = vadd.f32 %v865, %v866
    %v870 = vadd.f32 %v867, %v868
    %v871 = vadd.f32 %v869, %v870
    %v873 = vrot.slane %v871, 6
    %v875 = vadd.f32 %v143, %v873
    %v876 = vtanh.pop %v875
    %v877 = vmul.f32 %v876, 0.5
    %v878 = vadd.f32 %v877, 0.5
    %v880 = vrot.slane %v769, 6
    %v882 = vmul.f32 %v878, %v880
    %884 = vrot.lane.b32.xlu0 %v876, 96
    %v885 = vpop.permute.xlu0 %884
    %v887 = vmul.f32 %v878, %v885
    %889 = vrot.lane.b32.xlu0 %v887, 16
    %v890 = vpop.permute.xlu0 %889
    %v892 = vadd.f32 %v882, %v890
    %v893 = vtanh.pop %v892
    %895 = vrot.lane.b32.xlu0 %v893, 32
    %v896 = vpop.permute.xlu0 %895
    %v898 = vmul.f32 %v878, %v896
    %900 = vset.pattern.permute.xlu0 48
    %901 = vperm.xlu0 %900, %v898
    %v902 = vpop.permute.xlu0 %901
    %v904 = vmul.f32 %v902, %v152
    %905 = vset.pattern.permute.xlu0 49
    %906 = vperm.xlu0 %905, %v898
    %v907 = vpop.permute.xlu0 %906
    %v909 = vmul.f32 %v907, %v158
    %910 = vset.pattern.permute.xlu0 50
    %911 = vperm.xlu0 %910, %v898
    %v912 = vpop.permute.xlu0 %911
    %v914 = vmul.f32 %v912, %v164
    %915 = vset.pattern.permute.xlu0 51
    %916 = vperm.xlu0 %915, %v898
    %v917 = vpop.permute.xlu0 %916
    %v919 = vmul.f32 %v917, %v170
    %920 = vset.pattern.permute.xlu0 52
    %921 = vperm.xlu0 %920, %v898
    %v922 = vpop.permute.xlu0 %921
    %v924 = vmul.f32 %v922, %v176
    %925 = vset.pattern.permute.xlu0 53
    %926 = vperm.xlu0 %925, %v898
    %v927 = vpop.permute.xlu0 %926
    %v929 = vmul.f32 %v927, %v182
    %930 = vset.pattern.permute.xlu0 54
    %931 = vperm.xlu0 %930, %v898
    %v932 = vpop.permute.xlu0 %931
    %v934 = vmul.f32 %v932, %v188
    %935 = vset.pattern.permute.xlu0 55
    %936 = vperm.xlu0 %935, %v898
    %v937 = vpop.permute.xlu0 %936
    %v939 = vmul.f32 %v937, %v194
    %940 = vset.pattern.permute.xlu0 56
    %941 = vperm.xlu0 %940, %v898
    %v942 = vpop.permute.xlu0 %941
    %v944 = vmul.f32 %v942, %v200
    %945 = vset.pattern.permute.xlu0 57
    %946 = vperm.xlu0 %945, %v898
    %v947 = vpop.permute.xlu0 %946
    %v949 = vmul.f32 %v947, %v206
    %950 = vset.pattern.permute.xlu0 58
    %951 = vperm.xlu0 %950, %v898
    %v952 = vpop.permute.xlu0 %951
    %v954 = vmul.f32 %v952, %v212
    %955 = vset.pattern.permute.xlu0 59
    %956 = vperm.xlu0 %955, %v898
    %v957 = vpop.permute.xlu0 %956
    %v959 = vmul.f32 %v957, %v218
    %960 = vset.pattern.permute.xlu0 60
    %961 = vperm.xlu0 %960, %v898
    %v962 = vpop.permute.xlu0 %961
    %v964 = vmul.f32 %v962, %v224
    %965 = vset.pattern.permute.xlu0 61
    %966 = vperm.xlu0 %965, %v898
    %v967 = vpop.permute.xlu0 %966
    %v969 = vmul.f32 %v967, %v230
    %970 = vset.pattern.permute.xlu0 62
    %971 = vperm.xlu0 %970, %v898
    %v972 = vpop.permute.xlu0 %971
    %v974 = vmul.f32 %v972, %v236
    %975 = vset.pattern.permute.xlu0 63
    %976 = vperm.xlu0 %975, %v898
    %v977 = vpop.permute.xlu0 %976
    %v979 = vmul.f32 %v977, %v242
    %v980 = vadd.f32 %v904, %v909
    %v981 = vadd.f32 %v914, %v919
    %v982 = vadd.f32 %v924, %v929
    %v983 = vadd.f32 %v934, %v939
    %v984 = vadd.f32 %v944, %v949
    %v985 = vadd.f32 %v954, %v959
    %v986 = vadd.f32 %v964, %v969
    %v987 = vadd.f32 %v974, %v979
    %v988 = vadd.f32 %v980, %v981
    %v989 = vadd.f32 %v982, %v983
    %v990 = vadd.f32 %v984, %v985
    %v991 = vadd.f32 %v986, %v987
    %v992 = vadd.f32 %v988, %v989
    %v993 = vadd.f32 %v990, %v991
    %v994 = vadd.f32 %v992, %v993
    %v996 = vrot.slane %v994, 6
    %v998 = vadd.f32 %v143, %v996
    %v999 = vtanh.pop %v998
    %v1000 = vmul.f32 %v999, 0.5
    %v1001 = vadd.f32 %v1000, 0.5
    %v1003 = vrot.slane %v892, 6
    %v1005 = vmul.f32 %v1001, %v1003
    %1007 = vrot.lane.b32.xlu0 %v999, 96
    %v1008 = vpop.permute.xlu0 %1007
    %v1010 = vmul.f32 %v1001, %v1008
    %1012 = vrot.lane.b32.xlu0 %v1010, 16
    %v1013 = vpop.permute.xlu0 %1012
    %v1015 = vadd.f32 %v1005, %v1013
    %v1016 = vtanh.pop %v1015
    %1018 = vrot.lane.b32.xlu0 %v1016, 32
    %v1019 = vpop.permute.xlu0 %1018
    %v1021 = vmul.f32 %v1001, %v1019
    %vm1022 = vcmp.eq.s32.totalorder %v146, 0
    %v1024 = vrot.slane %v1021, 4
    %1025 = vrot.lane.b32.xlu0 %v1024, 80
    %v1026 = vpop.permute.xlu0 %1025
    %v1028 = vrot.slane %v898, 2
    %1029 = vrot.lane.b32.xlu0 %v1028, 80
    %v1030 = vpop.permute.xlu0 %1029
    %v1032 = vsel %vm1022, %v1026, %v1030
    %v1034 = vrot.slane %v1015, 4
    %1035 = vrot.lane.b32.xlu0 %v1034, 112
    %v1036 = vpop.permute.xlu0 %1035
    %v1038 = vrot.slane %v892, 2
    %1039 = vrot.lane.b32.xlu0 %v1038, 112
    %v1040 = vpop.permute.xlu0 %1039
    %v1042 = vsel %vm1022, %v1036, %v1040
    %1044 = vset.pattern.permute.xlu0 0
    %1045 = vperm.xlu0 %1044, %v1032
    %v1046 = vpop.permute.xlu0 %1045
    %v1048 = vmul.f32 %v1046, %v152
    %1049 = vset.pattern.permute.xlu0 1
    %1050 = vperm.xlu0 %1049, %v1032
    %v1051 = vpop.permute.xlu0 %1050
    %v1053 = vmul.f32 %v1051, %v158
    %1054 = vset.pattern.permute.xlu0 2
    %1055 = vperm.xlu0 %1054, %v1032
    %v1056 = vpop.permute.xlu0 %1055
    %v1058 = vmul.f32 %v1056, %v164
    %1059 = vset.pattern.permute.xlu0 3
    %1060 = vperm.xlu0 %1059, %v1032
    %v1061 = vpop.permute.xlu0 %1060
    %v1063 = vmul.f32 %v1061, %v170
    %1064 = vset.pattern.permute.xlu0 4
    %1065 = vperm.xlu0 %1064, %v1032
    %v1066 = vpop.permute.xlu0 %1065
    %v1068 = vmul.f32 %v1066, %v176
    %1069 = vset.pattern.permute.xlu0 5
    %1070 = vperm.xlu0 %1069, %v1032
    %v1071 = vpop.permute.xlu0 %1070
    %v1073 = vmul.f32 %v1071, %v182
    %1074 = vset.pattern.permute.xlu0 6
    %1075 = vperm.xlu0 %1074, %v1032
    %v1076 = vpop.permute.xlu0 %1075
    %v1078 = vmul.f32 %v1076, %v188
    %1079 = vset.pattern.permute.xlu0 7
    %1080 = vperm.xlu0 %1079, %v1032
    %v1081 = vpop.permute.xlu0 %1080
    %v1083 = vmul.f32 %v1081, %v194
    %1084 = vset.pattern.permute.xlu0 8
    %1085 = vperm.xlu0 %1084, %v1032
    %v1086 = vpop.permute.xlu0 %1085
    %v1088 = vmul.f32 %v1086, %v200
    %1089 = vset.pattern.permute.xlu0 9
    %1090 = vperm.xlu0 %1089, %v1032
    %v1091 = vpop.permute.xlu0 %1090
    %v1093 = vmul.f32 %v1091, %v206
    %1094 = vset.pattern.permute.xlu0 10
    %1095 = vperm.xlu0 %1094, %v1032
    %v1096 = vpop.permute.xlu0 %1095
    %v1098 = vmul.f32 %v1096, %v212
    %1099 = vset.pattern.permute.xlu0 11
    %1100 = vperm.xlu0 %1099, %v1032
    %v1101 = vpop.permute.xlu0 %1100
    %v1103 = vmul.f32 %v1101, %v218
    %1104 = vset.pattern.permute.xlu0 12
    %1105 = vperm.xlu0 %1104, %v1032
    %v1106 = vpop.permute.xlu0 %1105
    %v1108 = vmul.f32 %v1106, %v224
    %1109 = vset.pattern.permute.xlu0 13
    %1110 = vperm.xlu0 %1109, %v1032
    %v1111 = vpop.permute.xlu0 %1110
    %v1113 = vmul.f32 %v1111, %v230
    %1114 = vset.pattern.permute.xlu0 14
    %1115 = vperm.xlu0 %1114, %v1032
    %v1116 = vpop.permute.xlu0 %1115
    %v1118 = vmul.f32 %v1116, %v236
    %1119 = vset.pattern.permute.xlu0 15
    %1120 = vperm.xlu0 %1119, %v1032
    %v1121 = vpop.permute.xlu0 %1120
    %v1123 = vmul.f32 %v1121, %v242
    %v1124 = vadd.f32 %v1048, %v1053
    %v1125 = vadd.f32 %v1058, %v1063
    %v1126 = vadd.f32 %v1068, %v1073
    %v1127 = vadd.f32 %v1078, %v1083
    %v1128 = vadd.f32 %v1088, %v1093
    %v1129 = vadd.f32 %v1098, %v1103
    %v1130 = vadd.f32 %v1108, %v1113
    %v1131 = vadd.f32 %v1118, %v1123
    %v1132 = vadd.f32 %v1124, %v1125
    %v1133 = vadd.f32 %v1126, %v1127
    %v1134 = vadd.f32 %v1128, %v1129
    %v1135 = vadd.f32 %v1130, %v1131
    %v1136 = vadd.f32 %v1132, %v1133
    %v1137 = vadd.f32 %v1134, %v1135
    %v1138 = vadd.f32 %v1136, %v1137
    %v1140 = vrot.slane %v1138, 2
    %v1142 = vadd.f32 %v143, %v1140
    %v1143 = vtanh.pop %v1142
    %v1144 = vmul.f32 %v1143, 0.5
    %v1145 = vadd.f32 %v1144, 0.5
    %v1147 = vrot.slane %v1042, 2
    %1148 = vrot.lane.b32.xlu0 %v1147, 16
    %v1149 = vpop.permute.xlu0 %1148
    %v1151 = vmul.f32 %v1145, %v1149
    %1153 = vrot.lane.b32.xlu0 %v1143, 96
    %v1154 = vpop.permute.xlu0 %1153
    %v1156 = vmul.f32 %v1145, %v1154
    %1158 = vrot.lane.b32.xlu0 %v1156, 16
    %v1159 = vpop.permute.xlu0 %1158
    %v1161 = vadd.f32 %v1151, %v1159
    %v1162 = vtanh.pop %v1161
    %1164 = vrot.lane.b32.xlu0 %v1162, 32
    %v1165 = vpop.permute.xlu0 %1164
    %v1167 = vmul.f32 %v1145, %v1165
    %v1169 = vrot.slane %v1167, 6
    %1170 = vrot.lane.b32.xlu0 %v1169, 80
    %v1171 = vpop.permute.xlu0 %1170
    %v1173 = vsel %vm1022, %v1171, %v1030
    %v1175 = vrot.slane %v1173, 1
    %v1177 = vsub.f32 %v1173, %v1175
    %v1178 = vand.u32 2147483647, %v1177
    %v1179 = vmul.f32 %v1173, %v1175
    %v1180 = vadd.f32 %v1173, %v1175
    %v1181 = vmul.f32 %v1180, 0.5
    %1183 = vrot.lane.b32.xlu0 %v1178, 16
    %v1184 = vpop.permute.xlu0 %1183
    %1186 = vrot.lane.b32.xlu0 %v1175, 32
    %v1187 = vpop.permute.xlu0 %1186
    %1190 = vrot.lane.b32.xlu0 %v1179, 48
    %v1191 = vpop.permute.xlu0 %1190
    %1194 = vrot.lane.b32.xlu0 %v1181, 64
    %v1195 = vpop.permute.xlu0 %1194
    %vm1197 = vcmask 130048
    %v1198 = vsel %vm1197, %v1173, %v1184
    %vm1199 = vcmask 261120
    %v1200 = vsel %vm1199, %v1198, %v1187
    %vm1201 = vcmask 392192
    %v1202 = vsel %vm1201, %v1200, %v1191
    %vm1203 = vcmask 523264
    %v1204 = vsel %vm1203, %v1202, %v1195
    %v1205 = vld [vmem:[%s2 + $0x20] sm:$0xff]
    %v1206 = vld [vmem:[%s2 + $0x28] sm:$0xff]
    %v1207 = vld [vmem:[%s2 + $0x30] sm:$0xff]
    %v1208 = vld [vmem:[%s2 + $0x38] sm:$0xff]
    %v1209 = vld [vmem:[%s2 + $0x40] sm:$0xff]
    %v1210 = vld [vmem:[%s2 + $0x48] sm:$0xff]
    %v1211 = vld [vmem:[%s2 + $0x50] sm:$0xff]
    %v1212 = vld [vmem:[%s2 + $0x58] sm:$0xff]
    %v1213 = vld [vmem:[%s2 + $0x60] sm:$0xff]
    %v1214 = vld [vmem:[%s2 + $0x68] sm:$0xff]
    %v1215 = vld [vmem:[%s2 + $0x70] sm:$0x1]
    %v1216 = vld [vmem:[%s2 + $0x38] sm:$0x1]
    %vm1217 = vcmask 654336
    %v1219 = vsel %vm1217, %v1204, 0
    %1221 = vmatpush.msra.mxu0 0.0
    %1222 = vmatpush.msra.mxu0 0.0
    %1223 = vmatpush.msra.mxu0 0.0
    %1224 = vmatpush.msra.mxu0 0.0
    %1225 = vmatpush.msra.mxu0 0.0
    %1226 = vmatpush.msra.mxu0 0.0
    %1227 = vmatpush.msra.mxu0 %v1214
    %1228 = vmatpush.msra.mxu0 %v1213
    %1229 = vmatpush.msra.mxu0 %v1212
    %1230 = vmatpush.msra.mxu0 %v1211
    %1231 = vmatpush.msra.mxu0 %v1210
    %1232 = vmatpush.msra.mxu0 %v1209
    %1233 = vmatpush.msra.mxu0 %v1208
    %1234 = vmatpush.msra.mxu0 %v1207
    %1235 = vmatpush.msra.mxu0 %v1206
    %1236 = vmatpush.msra.mxu0 %v1205
    %1237 = vmatmul.f32.gmra.mxu0 %v1219
    %v1238 = vpop.f32.mrf.mxu0
    %v1239 = vadd.f32 %v1215, %v1238
    %1240 = vdwg.mxu0
    %1245 = vrot.lane.b32.xlu0 %v1205, 64
    %v1246 = vpop.permute.xlu0 %1245
    %1247 = vrot.lane.b32.xlu0 %v1206, 64
    %v1248 = vpop.permute.xlu0 %1247
    %1249 = vrot.lane.b32.xlu0 %v1207, 64
    %v1250 = vpop.permute.xlu0 %1249
    %1251 = vrot.lane.b32.xlu0 %v1216, 64
    %v1252 = vpop.permute.xlu0 %1251
    %1257 = vrot.lane.b32.xlu0 %v1215, 64
    %v1258 = vpop.permute.xlu0 %1257
    %vm1260 = vcmask 203776
    %v1262 = vsel %vm1260, %v1239, 0
    %vm1264 = vcmask 1040384
    %v1265 = vsel %vm1264, %v1252, 0
    %1267 = vmatpush.msra.mxu0 0.0
    %1268 = vmatpush.msra.mxu0 0.0
    %1269 = vmatpush.msra.mxu0 0.0
    %1270 = vmatpush.msra.mxu0 0.0
    %1271 = vmatpush.msra.mxu0 0.0
    %1272 = vmatpush.msra.mxu0 0.0
    %1273 = vmatpush.msra.mxu0 0.0
    %1274 = vmatpush.msra.mxu0 0.0
    %1275 = vmatpush.msra.mxu0 0.0
    %1276 = vmatpush.msra.mxu0 0.0
    %1277 = vmatpush.msra.mxu0 0.0
    %1278 = vmatpush.msra.mxu0 0.0
    %1279 = vmatpush.msra.mxu0 %v1265
    %1280 = vmatpush.msra.mxu0 %v1250
    %1281 = vmatpush.msra.mxu0 %v1248
    %1282 = vmatpush.msra.mxu0 %v1246
    %1283 = vmatmul.f32.gmra.mxu0 %v1262
    %v1284 = vpop.f32.mrf.mxu0
    %v1285 = vadd.f32 %v1258, %v1284
    %1286 = vdwg.mxu0
    %vm1287 = vcmask 8192
    %1288 = vst.msk [vmem:[#allocation2] sm:$0x1] %vm1287, %v1285
    // Predicated region
    $region14: #{tpu_custom_call.1} parent=1 // pred_check
      _
    $region15: #{tpu_custom_call.1} parent=1 // pred_check_branch
      %1290 = sbr.rel (0) target = $region17
    $region16: #{tpu_custom_call.1} parent=1 // pred_region
      %1292 = vsyncadd [#allocation3], 0
      %s1294 = sshll.u32 [#allocation2], 4
      %s1295 = int_to_ptr.vmem [resolvable:$true] %s1294
      %s1296 = sshll.u32 %s3, 4
      %s1297 = int_to_ptr.hbm [resolvable:$true] %s1296
      %1299 = dma.vmem_to_hbm [thread:$0]  %s1295, 16, %s1297, [#allocation3]
    $region17: #{tpu_custom_call.1} parent=1 // pred_fallthru
      _
    // Predicated region
    $region18: #{tpu_custom_call.1} parent=1 // pred_check
      _
    $region19: #{tpu_custom_call.1} parent=1 // pred_check_branch
      %1301 = sbr.rel (0) target = $region21
    $region20: #{tpu_custom_call.1} parent=1 // pred_region
      %1303 = dma.done [#allocation3], 16
    $region21: #{tpu_custom_call.1} parent=1 // pred_fallthru
      _
    %1304 = vsyncpa [#allocation3], 1

</llo_original>
